<compile_context>
chip_gen: v7x
topology: tpu7x:2x2x1
jax: 0.10.0
libtpu: 0.0.40
codegen_flags: <defaults>
</compile_context>

<pallas_src>
import math

import jax
import jax.numpy as jnp
from jax.experimental import pallas as pl
from jax.experimental.pallas import tpu as pltpu


NEG_INF = -1e9
CLS_PAD = 128  # lane-dense padded classifier width


def encoder_classifier_kernel(
    x_ref, mq_ref, kbias_ref, bd_ref,
    wqkv_ref, bqkv_ref, wo_ref, bo_ref,
    g1_ref, be1_ref, w1_ref, b1_ref, w2_ref, b2_ref, g2_ref, be2_ref,
    wc_ref, bc_ref,
    out_ref,
):
  """One batch-tile of the fused encoder + classifier.

  Per grid step (TB = batch tile, S = padded seq, H = hidden, L = TB*S):
    x_ref     (TB, S, H)   bf16  embeddings (tok + pos)
    mq_ref    (TB, S, 1)   f32   query/pool-side mask (1 = real token)
    kbias_ref (1, 1, L)    f32   additive key-padding bias (0 / -1e9)
    bd_ref    (L, L)       f32   block-diagonal (same-sequence) bias
    out_ref   (1, TB, 128) f32   lane-padded classifier logits
  """
  TB, S, H = x_ref.shape
  L = TB * S

  def layer_norm(x, gamma, beta):
    mu = jnp.mean(x, axis=-1, keepdims=True)
    var = jnp.mean((x - mu) ** 2, axis=-1, keepdims=True)
    return (x - mu) * jax.lax.rsqrt(var + 1e-5) * gamma + beta

  x_flat = x_ref[...].reshape(L, H)                       # (L, H) bf16 (free: S % 8 == 0)

  # --- fused QKV: one MXU pass over the whole tile (1/sqrt(H) folded in wq) ---
  qkv = jnp.dot(x_flat, wqkv_ref[...],
                preferred_element_type=jnp.float32) + bqkv_ref[...]   # (L, 3H) f32
  qkv = qkv.astype(jnp.bfloat16)                          # single cast, then lane slices
  q = qkv[:, :H]
  k = qkv[:, H:2 * H]
  v = qkv[:, 2 * H:]

  # --- single-head self-attention, folded over the batch tile ----------------
  # One (L, L) score matmul with a block-diagonal mask instead of per-batch
  # (S,H)x(H,S) einsums: lane-dense softmax and better MXU fill at small S.
  scores = jnp.einsum('md,nd->mn', q, k,
                      preferred_element_type=jnp.float32)             # (L, L) f32
  scores = scores + bd_ref[...] + kbias_ref[...].reshape(1, L)

  scores = scores - jnp.max(scores, axis=-1, keepdims=True)
  p = jnp.exp(scores)
  attn = p * pl.reciprocal(jnp.sum(p, axis=-1, keepdims=True), approx=True)
  ctx = jnp.dot(attn.astype(jnp.bfloat16), v,
                preferred_element_type=jnp.float32)                   # (L, H)

  attn_out = jnp.dot(ctx.astype(jnp.bfloat16), wo_ref[...],
                     preferred_element_type=jnp.float32) + bo_ref[...]

  # Residual upcast happens per tile (no early whole-tensor f32 copy).
  h1 = layer_norm(x_flat.astype(jnp.float32) + attn_out,
                  g1_ref[...], be1_ref[...])                          # (L, H) f32

  # --- feed-forward -----------------------------------------------------------
  ff = jnp.dot(h1.astype(jnp.bfloat16), w1_ref[...],
               preferred_element_type=jnp.float32) + b1_ref[...]
  # TODO(synk): PyTorch nn.GELU default is the exact erf form; tanh approx used here.
  ff = jax.nn.gelu(ff, approximate=True)
  ff = jnp.dot(ff.astype(jnp.bfloat16), w2_ref[...],
               preferred_element_type=jnp.float32) + b2_ref[...]

  h2 = layer_norm(h1 + ff, g2_ref[...], be2_ref[...])                 # (L, H)

  # --- masked mean pool + classifier head -------------------------------------
  mq = mq_ref[...]                                                    # (TB, S, 1)
  h2_3d = h2.reshape(TB, S, H)
  denom = jnp.maximum(jnp.sum(mq, axis=1), 1e-6)                      # (TB, 1)
  pooled = jnp.sum(h2_3d * mq, axis=1) * pl.reciprocal(denom, approx=True)
  logits = (jnp.dot(pooled.astype(jnp.bfloat16), wc_ref[...],
                    preferred_element_type=jnp.float32)
            + bc_ref[...])                                            # (TB, 128)
  out_ref[0] = logits


def init_params(vocab_size, max_seq, hidden, ffn, num_labels, seed=0):
  key = jax.random.PRNGKey(seed)
  ks = jax.random.split(key, 12)
  n = lambda k, shape: (0.02 * jax.random.normal(k, shape)).astype(jnp.float32)
  return {
      "tok_emb": n(ks[0], (vocab_size, hidden)),
      "pos_emb": n(ks[1], (max_seq, hidden)),
      "wq": n(ks[2], (hidden, hidden)), "bq": jnp.zeros((1, hidden), jnp.float32),
      "wk": n(ks[3], (hidden, hidden)), "bk": jnp.zeros((1, hidden), jnp.float32),
      "wv": n(ks[4], (hidden, hidden)), "bv": jnp.zeros((1, hidden), jnp.float32),
      "wo": n(ks[5], (hidden, hidden)), "bo": jnp.zeros((1, hidden), jnp.float32),
      "g1": jnp.ones((1, hidden), jnp.float32), "be1": jnp.zeros((1, hidden), jnp.float32),
      "w1": n(ks[6], (hidden, ffn)), "b1": jnp.zeros((1, ffn), jnp.float32),
      "w2": n(ks[7], (ffn, hidden)), "b2": jnp.zeros((1, hidden), jnp.float32),
      "g2": jnp.ones((1, hidden), jnp.float32), "be2": jnp.zeros((1, hidden), jnp.float32),
      "wc": n(ks[8], (hidden, num_labels)), "bc": jnp.zeros((1, num_labels), jnp.float32),
  }


def prepare_params(params):
  """One-time weight reformatting (fusion / padding / bf16 casts), hoisted out
  of the per-call forward so it pays no per-call HBM reformatting traffic."""
  H = params["tok_emb"].shape[1]
  C = params["wc"].shape[1]
  scale = 1.0 / math.sqrt(H)
  bf16 = lambda a: a.astype(jnp.bfloat16)
  return {
      "hidden": H,
      "num_labels": C,
      "tok_emb": params["tok_emb"],
      "pos_emb": params["pos_emb"],
      "wqkv": bf16(jnp.concatenate(
          [params["wq"] * scale, params["wk"], params["wv"]], axis=1)),   # (H, 3H)
      "bqkv": jnp.concatenate(
          [params["bq"] * scale, params["bk"], params["bv"]], axis=1),    # (1, 3H) f32
      "wo": bf16(params["wo"]), "bo": params["bo"],
      "g1": params["g1"], "be1": params["be1"],
      "w1": bf16(params["w1"]), "b1": params["b1"],
      "w2": bf16(params["w2"]), "b2": params["b2"],
      "g2": params["g2"], "be2": params["be2"],
      "wc": bf16(jnp.pad(params["wc"], ((0, 0), (0, CLS_PAD - C)))),      # (H, 128)
      "bc": jnp.pad(params["bc"], ((0, 0), (0, CLS_PAD - C))),            # (1, 128)
  }


def _pick_batch_tile(B, S):
  """Batch-tile size: bound the folded (TB*S)^2 attention block (~4 MiB f32)
  while keeping the per-step output >= 8 rows when it doesn't blow the bound."""
  max_rows = 1024
  tb = max(1, min(B, max_rows // max(S, 1)))
  if tb >= B:
    return B
  if tb >= 8:
    tb = (tb // 8) * 8
  return tb


def tweet_classifier_forward(input_ids, attention_mask, prepared):
  """Equivalent of TweetClassifier.forward -> model(input_ids, attention_mask)[0]."""
  B, S = input_ids.shape
  H = prepared["hidden"]
  C = prepared["num_labels"]

  # ---- JAX glue: embedding gather + mask preprocessing (HBM table gather has
  # no clean Pallas equivalent at these sizes). ----
  x = (prepared["tok_emb"][input_ids]
       + prepared["pos_emb"][None, :S, :]).astype(jnp.bfloat16)        # (B, S, H)
  m = attention_mask.astype(jnp.float32)                               # (B, S)

  # Pad S to a sublane multiple and B to whole batch tiles so all in-kernel
  # reshapes stay layout-free.
  S_pad = ((S + 7) // 8) * 8
  TB = _pick_batch_tile(B, S_pad)
  B_pad = ((B + TB - 1) // TB) * TB
  if S_pad != S or B_pad != B:
    x = jnp.pad(x, ((0, B_pad - B), (0, S_pad - S), (0, 0)))
    m = jnp.pad(m, ((0, B_pad - B), (0, S_pad - S)))

  num_tiles = B_pad // TB
  L = TB * S_pad

  mq = m[:, :, None]                                                   # (B_pad, S_pad, 1)
  # Additive key-padding bias (0 for real keys, -1e9 for padded), flattened per tile.
  kbias = ((m - 1.0) * 1e9).reshape(num_tiles, 1, L)                   # (tiles, 1, L)
  # Block-diagonal (same-sequence) bias shared by every tile.
  bid = jnp.arange(L, dtype=jnp.int32) // S_pad
  bd = jnp.where(bid[:, None] == bid[None, :], 0.0, NEG_INF).astype(jnp.float32)

  w = prepared
  kernel_inputs = (
      x, mq, kbias, bd,
      w["wqkv"], w["bqkv"], w["wo"], w["bo"],
      w["g1"], w["be1"], w["w1"], w["b1"], w["w2"], w["b2"], w["g2"], w["be2"],
      w["wc"], w["bc"],
  )

  in_specs = [
      pl.BlockSpec((TB, S_pad, H), lambda b: (b, 0, 0)),   # x: per-tile stream
      pl.BlockSpec((TB, S_pad, 1), lambda b: (b, 0, 0)),   # pool mask
      pl.BlockSpec((1, 1, L), lambda b: (b, 0, 0)),        # key bias
  ] + [pl.BlockSpec(a.shape, lambda b: (0, 0))             # bd + weights: resident
       for a in kernel_inputs[3:]]
  out_spec = pl.BlockSpec((1, TB, CLS_PAD), lambda b: (b, 0, 0))

  # Rough cost hint so XLA schedules the surrounding gather/pad glue sensibly.
  F = w["w1"].shape[1]
  BS = B_pad * S_pad
  flops = (2 * BS * H * 3 * H                 # qkv
           + num_tiles * 4 * L * L * H        # scores + ctx
           + 2 * BS * H * H                   # attn output proj
           + 4 * BS * H * F                   # ffn
           + 2 * B_pad * H * CLS_PAD)         # classifier
  transcendentals = num_tiles * L * L + BS * F
  bytes_accessed = (x.size * 2 + mq.size * 4 + kbias.size * 4 + bd.size * 4
                    + sum(int(a.size) * a.dtype.itemsize for a in kernel_inputs[4:])
                    + num_tiles * TB * CLS_PAD * 4)

  out = pl.pallas_call(
      encoder_classifier_kernel,
      out_shape=jax.ShapeDtypeStruct((num_tiles, TB, CLS_PAD), jnp.float32),
      grid=(num_tiles,),
      in_specs=in_specs,
      out_specs=out_spec,
      compiler_params=pltpu.CompilerParams(
          dimension_semantics=("parallel",),           # megacore-shard batch tiles
          vmem_limit_bytes=48 * 1024 * 1024,           # explicit (v5e default is 16 MiB)
      ),
      cost_estimate=pl.CostEstimate(
          flops=int(flops),
          transcendentals=int(transcendentals),
          bytes_accessed=int(bytes_accessed),
      ),
  )(*kernel_inputs)

  return out.reshape(B_pad, CLS_PAD)[:B, :C]


if __name__ == "__main__":
  B, S, H, F, C = 2, 8, 128, 256, 3
  VOCAB = 1000

  key = jax.random.PRNGKey(0)
  k_ids, _ = jax.random.split(key)
  input_ids = jax.random.randint(k_ids, (B, S), 0, VOCAB, dtype=jnp.int32)
  # second example has 3 padding tokens at the end
  attention_mask = jnp.array(
      [[1, 1, 1, 1, 1, 1, 1, 1],
       [1, 1, 1, 1, 1, 0, 0, 0]], dtype=jnp.int32)

  params = init_params(VOCAB, S, H, F, C, seed=0)
  prepared = prepare_params(params)      # one-time weight fusion / padding / casts

  logits = tweet_classifier_forward(input_ids, attention_mask, prepared)
  jax.block_until_ready(logits)
  assert logits.shape == (B, C) and logits.dtype == jnp.float32
  assert bool(jnp.all(jnp.isfinite(logits)))
  print("KERNEL_OK")
</pallas_src>

<mosaic_0001>
module attributes {stable_mosaic.version = 11 : i64} {
  func.func @encoder_classifier_kernel(%arg0: i32, %arg1: memref<2x8x128xbf16, #tpu.memory_space<vmem>>, %arg2: memref<2x8x1xf32, #tpu.memory_space<vmem>>, %arg3: memref<1x1x16xf32, #tpu.memory_space<vmem>>, %arg4: memref<16x16xf32, #tpu.memory_space<vmem>>, %arg5: memref<128x384xbf16, #tpu.memory_space<vmem>>, %arg6: memref<1x384xf32, #tpu.memory_space<vmem>>, %arg7: memref<128x128xbf16, #tpu.memory_space<vmem>>, %arg8: memref<1x128xf32, #tpu.memory_space<vmem>>, %arg9: memref<1x128xf32, #tpu.memory_space<vmem>>, %arg10: memref<1x128xf32, #tpu.memory_space<vmem>>, %arg11: memref<128x256xbf16, #tpu.memory_space<vmem>>, %arg12: memref<1x256xf32, #tpu.memory_space<vmem>>, %arg13: memref<256x128xbf16, #tpu.memory_space<vmem>>, %arg14: memref<1x128xf32, #tpu.memory_space<vmem>>, %arg15: memref<1x128xf32, #tpu.memory_space<vmem>>, %arg16: memref<1x128xf32, #tpu.memory_space<vmem>>, %arg17: memref<128x128xbf16, #tpu.memory_space<vmem>>, %arg18: memref<1x128xf32, #tpu.memory_space<vmem>>, %arg19: memref<1x2x128xf32, #tpu.memory_space<vmem>>) attributes {dimension_semantics = [#tpu.dimension_semantics<parallel>], iteration_bounds = array<i64: 1>, scalar_prefetch = 0 : i64, scratch_operands = 0 : i64, tpu.core_type = #tpu.core_type<tc>, window_params = [{transform_indices = @transform_0, window_bounds = array<i64: 2, 8, 128>}, {transform_indices = @transform_1, window_bounds = array<i64: 2, 8, 1>}, {transform_indices = @transform_2, window_bounds = array<i64: 1, 1, 16>}, {pipeline_mode = #tpu.pipeline_mode<synchronous>, transform_indices = @transform_3, window_bounds = array<i64: 16, 16>}, {pipeline_mode = #tpu.pipeline_mode<synchronous>, transform_indices = @transform_4, window_bounds = array<i64: 128, 384>}, {pipeline_mode = #tpu.pipeline_mode<synchronous>, transform_indices = @transform_5, window_bounds = array<i64: 1, 384>}, {pipeline_mode = #tpu.pipeline_mode<synchronous>, transform_indices = @transform_6, window_bounds = array<i64: 128, 128>}, {pipeline_mode = #tpu.pipeline_mode<synchronous>, transform_indices = @transform_7, window_bounds = array<i64: 1, 128>}, {pipeline_mode = #tpu.pipeline_mode<synchronous>, transform_indices = @transform_8, window_bounds = array<i64: 1, 128>}, {pipeline_mode = #tpu.pipeline_mode<synchronous>, transform_indices = @transform_9, window_bounds = array<i64: 1, 128>}, {pipeline_mode = #tpu.pipeline_mode<synchronous>, transform_indices = @transform_10, window_bounds = array<i64: 128, 256>}, {pipeline_mode = #tpu.pipeline_mode<synchronous>, transform_indices = @transform_11, window_bounds = array<i64: 1, 256>}, {pipeline_mode = #tpu.pipeline_mode<synchronous>, transform_indices = @transform_12, window_bounds = array<i64: 256, 128>}, {pipeline_mode = #tpu.pipeline_mode<synchronous>, transform_indices = @transform_13, window_bounds = array<i64: 1, 128>}, {pipeline_mode = #tpu.pipeline_mode<synchronous>, transform_indices = @transform_14, window_bounds = array<i64: 1, 128>}, {pipeline_mode = #tpu.pipeline_mode<synchronous>, transform_indices = @transform_15, window_bounds = array<i64: 1, 128>}, {pipeline_mode = #tpu.pipeline_mode<synchronous>, transform_indices = @transform_16, window_bounds = array<i64: 128, 128>}, {pipeline_mode = #tpu.pipeline_mode<synchronous>, transform_indices = @transform_17, window_bounds = array<i64: 1, 128>}, {transform_indices = @transform_18, window_bounds = array<i64: 1, 2, 128>}]} {
    %c0 = arith.constant 0 : index
    %c0_0 = arith.constant 0 : index
    %c0_1 = arith.constant 0 : index
    %0 = vector.load %arg1[%c0, %c0_0, %c0_1] : memref<2x8x128xbf16, #tpu.memory_space<vmem>>, vector<2x8x128xbf16>
    %1 = vector.shape_cast %0 : vector<2x8x128xbf16> to vector<16x128xbf16>
    %c0_2 = arith.constant 0 : index
    %c0_3 = arith.constant 0 : index
    %2 = vector.load %arg5[%c0_2, %c0_3] : memref<128x384xbf16, #tpu.memory_space<vmem>>, vector<128x384xbf16>
    %cst = arith.constant dense<0.000000e+00> : vector<16x384xf32>
    %3 = tpu.matmul %1, %2, %cst {dimension_numbers = #tpu.dot_dimension_numbers<[1], [0], [0], [1], [0, 0, 1, 1], [], []>} : vector<16x128xbf16>, vector<128x384xbf16>, vector<16x384xf32> -> vector<16x384xf32>
    %c0_4 = arith.constant 0 : index
    %c0_5 = arith.constant 0 : index
    %4 = vector.load %arg6[%c0_4, %c0_5] : memref<1x384xf32, #tpu.memory_space<vmem>>, vector<1x384xf32>
    %5 = vector.broadcast %4 : vector<1x384xf32> to vector<16x384xf32>
    %6 = arith.addf %3, %5 : vector<16x384xf32>
    %7 = arith.truncf %6 : vector<16x384xf32> to vector<16x384xbf16>
    %8 = vector.extract_strided_slice %7 {offsets = [0, 0], sizes = [16, 128], strides = [1, 1]} : vector<16x384xbf16> to vector<16x128xbf16>
    %9 = vector.extract_strided_slice %7 {offsets = [0, 128], sizes = [16, 128], strides = [1, 1]} : vector<16x384xbf16> to vector<16x128xbf16>
    %10 = vector.extract_strided_slice %7 {offsets = [0, 256], sizes = [16, 128], strides = [1, 1]} : vector<16x384xbf16> to vector<16x128xbf16>
    "tpu.trace_start"() <{level = 10 : i32, message = "md,nd->mn"}> : () -> ()
    %cst_6 = arith.constant dense<0.000000e+00> : vector<16x16xf32>
    %11 = tpu.matmul %8, %9, %cst_6 {dimension_numbers = #tpu.dot_dimension_numbers<[1], [1], [0], [0], [0, 0, 1, 0], [], []>} : vector<16x128xbf16>, vector<16x128xbf16>, vector<16x16xf32> -> vector<16x16xf32>
    "tpu.trace_stop"() : () -> ()
    %c0_7 = arith.constant 0 : index
    %c0_8 = arith.constant 0 : index
    %12 = vector.load %arg4[%c0_7, %c0_8] : memref<16x16xf32, #tpu.memory_space<vmem>>, vector<16x16xf32>
    %13 = arith.addf %11, %12 : vector<16x16xf32>
    %c0_9 = arith.constant 0 : index
    %c0_10 = arith.constant 0 : index
    %c0_11 = arith.constant 0 : index
    %14 = vector.load %arg3[%c0_9, %c0_10, %c0_11] : memref<1x1x16xf32, #tpu.memory_space<vmem>>, vector<1x1x16xf32>
    %15 = vector.shape_cast %14 : vector<1x1x16xf32> to vector<1x16xf32>
    %16 = vector.broadcast %15 : vector<1x16xf32> to vector<16x16xf32>
    %17 = arith.addf %13, %16 : vector<16x16xf32>
    %cst_12 = arith.constant dense<0xFF800000> : vector<16xf32>
    %18 = vector.multi_reduction <maximumf>, %17, %cst_12 [1] : vector<16x16xf32> to vector<16xf32>
    %19 = vector.shape_cast %18 : vector<16xf32> to vector<16x1xf32>
    %20 = vector.broadcast %19 : vector<16x1xf32> to vector<16x16xf32>
    %21 = arith.subf %17, %20 : vector<16x16xf32>
    %22 = math.exp %21 : vector<16x16xf32>
    %cst_13 = arith.constant dense<0.000000e+00> : vector<16xf32>
    %23 = vector.multi_reduction <add>, %22, %cst_13 [1] : vector<16x16xf32> to vector<16xf32>
    %24 = vector.shape_cast %23 : vector<16xf32> to vector<16x1xf32>
    %25 = tpu.reciprocal %24 {approx = true} : vector<16x1xf32> -> vector<16x1xf32>
    %26 = vector.broadcast %25 : vector<16x1xf32> to vector<16x16xf32>
    %27 = arith.mulf %22, %26 : vector<16x16xf32>
    %28 = arith.truncf %27 : vector<16x16xf32> to vector<16x16xbf16>
    %cst_14 = arith.constant dense<0.000000e+00> : vector<16x128xf32>
    %29 = tpu.matmul %28, %10, %cst_14 {dimension_numbers = #tpu.dot_dimension_numbers<[1], [0], [0], [1], [0, 0, 1, 1], [], []>} : vector<16x16xbf16>, vector<16x128xbf16>, vector<16x128xf32> -> vector<16x128xf32>
    %30 = arith.truncf %29 : vector<16x128xf32> to vector<16x128xbf16>
    %c0_15 = arith.constant 0 : index
    %c0_16 = arith.constant 0 : index
    %31 = vector.load %arg7[%c0_15, %c0_16] : memref<128x128xbf16, #tpu.memory_space<vmem>>, vector<128x128xbf16>
    %cst_17 = arith.constant dense<0.000000e+00> : vector<16x128xf32>
    %32 = tpu.matmul %30, %31, %cst_17 {dimension_numbers = #tpu.dot_dimension_numbers<[1], [0], [0], [1], [0, 0, 1, 1], [], []>} : vector<16x128xbf16>, vector<128x128xbf16>, vector<16x128xf32> -> vector<16x128xf32>
    %c0_18 = arith.constant 0 : index
    %c0_19 = arith.constant 0 : index
    %33 = vector.load %arg8[%c0_18, %c0_19] : memref<1x128xf32, #tpu.memory_space<vmem>>, vector<1x128xf32>
    %34 = vector.broadcast %33 : vector<1x128xf32> to vector<16x128xf32>
    %35 = arith.addf %32, %34 : vector<16x128xf32>
    %36 = arith.extf %1 : vector<16x128xbf16> to vector<16x128xf32>
    %37 = arith.addf %36, %35 : vector<16x128xf32>
    %c0_20 = arith.constant 0 : index
    %c0_21 = arith.constant 0 : index
    %38 = vector.load %arg9[%c0_20, %c0_21] : memref<1x128xf32, #tpu.memory_space<vmem>>, vector<1x128xf32>
    %c0_22 = arith.constant 0 : index
    %c0_23 = arith.constant 0 : index
    %39 = vector.load %arg10[%c0_22, %c0_23] : memref<1x128xf32, #tpu.memory_space<vmem>>, vector<1x128xf32>
    %cst_24 = arith.constant dense<0.000000e+00> : vector<16xf32>
    %40 = vector.multi_reduction <add>, %37, %cst_24 [1] : vector<16x128xf32> to vector<16xf32>
    %41 = vector.shape_cast %40 : vector<16xf32> to vector<16x1xf32>
    %cst_25 = arith.constant 1.280000e+02 : f32
    %42 = vector.broadcast %cst_25 : f32 to vector<16x1xf32>
    %43 = arith.divf %41, %42 : vector<16x1xf32>
    %44 = vector.broadcast %43 : vector<16x1xf32> to vector<16x128xf32>
    %45 = arith.subf %37, %44 : vector<16x128xf32>
    %46 = arith.mulf %45, %45 : vector<16x128xf32>
    %cst_26 = arith.constant dense<0.000000e+00> : vector<16xf32>
    %47 = vector.multi_reduction <add>, %46, %cst_26 [1] : vector<16x128xf32> to vector<16xf32>
    %48 = vector.shape_cast %47 : vector<16xf32> to vector<16x1xf32>
    %cst_27 = arith.constant 1.280000e+02 : f32
    %49 = vector.broadcast %cst_27 : f32 to vector<16x1xf32>
    %50 = arith.divf %48, %49 : vector<16x1xf32>
    %51 = vector.broadcast %43 : vector<16x1xf32> to vector<16x128xf32>
    %52 = arith.subf %37, %51 : vector<16x128xf32>
    %cst_28 = arith.constant 9.99999974E-6 : f32
    %53 = vector.broadcast %cst_28 : f32 to vector<16x1xf32>
    %54 = arith.addf %50, %53 : vector<16x1xf32>
    %55 = math.rsqrt %54 : vector<16x1xf32>
    %56 = vector.broadcast %55 : vector<16x1xf32> to vector<16x128xf32>
    %57 = arith.mulf %52, %56 : vector<16x128xf32>
    %58 = vector.broadcast %38 : vector<1x128xf32> to vector<16x128xf32>
    %59 = arith.mulf %57, %58 : vector<16x128xf32>
    %60 = vector.broadcast %39 : vector<1x128xf32> to vector<16x128xf32>
    %61 = arith.addf %59, %60 : vector<16x128xf32>
    %62 = arith.truncf %61 : vector<16x128xf32> to vector<16x128xbf16>
    %c0_29 = arith.constant 0 : index
    %c0_30 = arith.constant 0 : index
    %63 = vector.load %arg11[%c0_29, %c0_30] : memref<128x256xbf16, #tpu.memory_space<vmem>>, vector<128x256xbf16>
    %cst_31 = arith.constant dense<0.000000e+00> : vector<16x256xf32>
    %64 = tpu.matmul %62, %63, %cst_31 {dimension_numbers = #tpu.dot_dimension_numbers<[1], [0], [0], [1], [0, 0, 1, 1], [], []>} : vector<16x128xbf16>, vector<128x256xbf16>, vector<16x256xf32> -> vector<16x256xf32>
    %c0_32 = arith.constant 0 : index
    %c0_33 = arith.constant 0 : index
    %65 = vector.load %arg12[%c0_32, %c0_33] : memref<1x256xf32, #tpu.memory_space<vmem>>, vector<1x256xf32>
    %66 = vector.broadcast %65 : vector<1x256xf32> to vector<16x256xf32>
    %67 = arith.addf %64, %66 : vector<16x256xf32>
    %68 = arith.mulf %67, %67 : vector<16x256xf32>
    %69 = arith.mulf %67, %68 : vector<16x256xf32>
    %cst_34 = arith.constant 4.471500e-02 : f32
    %70 = vector.broadcast %cst_34 : f32 to vector<16x256xf32>
    %71 = arith.mulf %70, %69 : vector<16x256xf32>
    %72 = arith.addf %67, %71 : vector<16x256xf32>
    %cst_35 = arith.constant 0.797884583 : f32
    %73 = vector.broadcast %cst_35 : f32 to vector<16x256xf32>
    %74 = arith.mulf %73, %72 : vector<16x256xf32>
    %75 = math.tanh %74 : vector<16x256xf32>
    %cst_36 = arith.constant 1.000000e+00 : f32
    %76 = vector.broadcast %cst_36 : f32 to vector<16x256xf32>
    %77 = arith.addf %76, %75 : vector<16x256xf32>
    %cst_37 = arith.constant 5.000000e-01 : f32
    %78 = vector.broadcast %cst_37 : f32 to vector<16x256xf32>
    %79 = arith.mulf %78, %77 : vector<16x256xf32>
    %80 = arith.mulf %67, %79 : vector<16x256xf32>
    %81 = arith.truncf %80 : vector<16x256xf32> to vector<16x256xbf16>
    %c0_38 = arith.constant 0 : index
    %c0_39 = arith.constant 0 : index
    %82 = vector.load %arg13[%c0_38, %c0_39] : memref<256x128xbf16, #tpu.memory_space<vmem>>, vector<256x128xbf16>
    %cst_40 = arith.constant dense<0.000000e+00> : vector<16x128xf32>
    %83 = tpu.matmul %81, %82, %cst_40 {dimension_numbers = #tpu.dot_dimension_numbers<[1], [0], [0], [1], [0, 0, 1, 1], [], []>} : vector<16x256xbf16>, vector<256x128xbf16>, vector<16x128xf32> -> vector<16x128xf32>
    %c0_41 = arith.constant 0 : index
    %c0_42 = arith.constant 0 : index
    %84 = vector.load %arg14[%c0_41, %c0_42] : memref<1x128xf32, #tpu.memory_space<vmem>>, vector<1x128xf32>
    %85 = vector.broadcast %84 : vector<1x128xf32> to vector<16x128xf32>
    %86 = arith.addf %83, %85 : vector<16x128xf32>
    %87 = arith.addf %61, %86 : vector<16x128xf32>
    %c0_43 = arith.constant 0 : index
    %c0_44 = arith.constant 0 : index
    %88 = vector.load %arg15[%c0_43, %c0_44] : memref<1x128xf32, #tpu.memory_space<vmem>>, vector<1x128xf32>
    %c0_45 = arith.constant 0 : index
    %c0_46 = arith.constant 0 : index
    %89 = vector.load %arg16[%c0_45, %c0_46] : memref<1x128xf32, #tpu.memory_space<vmem>>, vector<1x128xf32>
    %cst_47 = arith.constant dense<0.000000e+00> : vector<16xf32>
    %90 = vector.multi_reduction <add>, %87, %cst_47 [1] : vector<16x128xf32> to vector<16xf32>
    %91 = vector.shape_cast %90 : vector<16xf32> to vector<16x1xf32>
    %cst_48 = arith.constant 1.280000e+02 : f32
    %92 = vector.broadcast %cst_48 : f32 to vector<16x1xf32>
    %93 = arith.divf %91, %92 : vector<16x1xf32>
    %94 = vector.broadcast %93 : vector<16x1xf32> to vector<16x128xf32>
    %95 = arith.subf %87, %94 : vector<16x128xf32>
    %96 = arith.mulf %95, %95 : vector<16x128xf32>
    %cst_49 = arith.constant dense<0.000000e+00> : vector<16xf32>
    %97 = vector.multi_reduction <add>, %96, %cst_49 [1] : vector<16x128xf32> to vector<16xf32>
    %98 = vector.shape_cast %97 : vector<16xf32> to vector<16x1xf32>
    %cst_50 = arith.constant 1.280000e+02 : f32
    %99 = vector.broadcast %cst_50 : f32 to vector<16x1xf32>
    %100 = arith.divf %98, %99 : vector<16x1xf32>
    %101 = vector.broadcast %93 : vector<16x1xf32> to vector<16x128xf32>
    %102 = arith.subf %87, %101 : vector<16x128xf32>
    %cst_51 = arith.constant 9.99999974E-6 : f32
    %103 = vector.broadcast %cst_51 : f32 to vector<16x1xf32>
    %104 = arith.addf %100, %103 : vector<16x1xf32>
    %105 = math.rsqrt %104 : vector<16x1xf32>
    %106 = vector.broadcast %105 : vector<16x1xf32> to vector<16x128xf32>
    %107 = arith.mulf %102, %106 : vector<16x128xf32>
    %108 = vector.broadcast %88 : vector<1x128xf32> to vector<16x128xf32>
    %109 = arith.mulf %107, %108 : vector<16x128xf32>
    %110 = vector.broadcast %89 : vector<1x128xf32> to vector<16x128xf32>
    %111 = arith.addf %109, %110 : vector<16x128xf32>
    %c0_52 = arith.constant 0 : index
    %c0_53 = arith.constant 0 : index
    %c0_54 = arith.constant 0 : index
    %112 = vector.load %arg2[%c0_52, %c0_53, %c0_54] : memref<2x8x1xf32, #tpu.memory_space<vmem>>, vector<2x8x1xf32>
    %113 = vector.shape_cast %111 : vector<16x128xf32> to vector<2x8x128xf32>
    %cst_55 = arith.constant dense<0.000000e+00> : vector<2x1xf32>
    %114 = vector.multi_reduction <add>, %112, %cst_55 [1] : vector<2x8x1xf32> to vector<2x1xf32>
    %cst_56 = arith.constant 9.99999997E-7 : f32
    %115 = vector.broadcast %cst_56 : f32 to vector<2x1xf32>
    %116 = arith.maximumf %114, %115 : vector<2x1xf32>
    %117 = vector.broadcast %112 : vector<2x8x1xf32> to vector<2x8x128xf32>
    %118 = arith.mulf %113, %117 : vector<2x8x128xf32>
    %cst_57 = arith.constant dense<0.000000e+00> : vector<2x128xf32>
    %119 = vector.multi_reduction <add>, %118, %cst_57 [1] : vector<2x8x128xf32> to vector<2x128xf32>
    %120 = tpu.reciprocal %116 {approx = true} : vector<2x1xf32> -> vector<2x1xf32>
    %121 = vector.broadcast %120 : vector<2x1xf32> to vector<2x128xf32>
    %122 = arith.mulf %119, %121 : vector<2x128xf32>
    %123 = arith.truncf %122 : vector<2x128xf32> to vector<2x128xbf16>
    %c0_58 = arith.constant 0 : index
    %c0_59 = arith.constant 0 : index
    %124 = vector.load %arg17[%c0_58, %c0_59] : memref<128x128xbf16, #tpu.memory_space<vmem>>, vector<128x128xbf16>
    %cst_60 = arith.constant dense<0.000000e+00> : vector<2x128xf32>
    %125 = tpu.matmul %123, %124, %cst_60 {dimension_numbers = #tpu.dot_dimension_numbers<[1], [0], [0], [1], [0, 0, 1, 1], [], []>} : vector<2x128xbf16>, vector<128x128xbf16>, vector<2x128xf32> -> vector<2x128xf32>
    %c0_61 = arith.constant 0 : index
    %c0_62 = arith.constant 0 : index
    %126 = vector.load %arg18[%c0_61, %c0_62] : memref<1x128xf32, #tpu.memory_space<vmem>>, vector<1x128xf32>
    %127 = vector.broadcast %126 : vector<1x128xf32> to vector<2x128xf32>
    %128 = arith.addf %125, %127 : vector<2x128xf32>
    %c0_63 = arith.constant 0 : index
    %c0_64 = arith.constant 0 : index
    %c0_65 = arith.constant 0 : index
    %129 = vector.load %arg19[%c0_63, %c0_64, %c0_65] : memref<1x2x128xf32, #tpu.memory_space<vmem>>, vector<1x2x128xf32>
    %130 = vector.shape_cast %129 : vector<1x2x128xf32> to vector<2x128xf32>
    %131 = vector.shape_cast %128 : vector<2x128xf32> to vector<1x2x128xf32>
    tpu.vector_store %arg19[%c0_63, %c0_64, %c0_65], %131 {strides = array<i32>} : memref<1x2x128xf32, #tpu.memory_space<vmem>>, vector<1x2x128xf32>,
    return
  }
  func.func @transform_0(%arg0: i32) -> (i32, i32, i32) {
    %c0_i32 = arith.constant 0 : i32
    %c0_i32_0 = arith.constant 0 : i32
    %c0_i32_1 = arith.constant 0 : i32
    return %arg0, %c0_i32, %c0_i32_0 : i32, i32, i32
  }
  func.func @transform_1(%arg0: i32) -> (i32, i32, i32) {
    %c0_i32 = arith.constant 0 : i32
    %c0_i32_0 = arith.constant 0 : i32
    %c0_i32_1 = arith.constant 0 : i32
    return %arg0, %c0_i32, %c0_i32_0 : i32, i32, i32
  }
  func.func @transform_2(%arg0: i32) -> (i32, i32, i32) {
    %c0_i32 = arith.constant 0 : i32
    %c0_i32_0 = arith.constant 0 : i32
    %c0_i32_1 = arith.constant 0 : i32
    return %arg0, %c0_i32, %c0_i32_0 : i32, i32, i32
  }
  func.func @transform_3(%arg0: i32) -> (i32, i32) {
    %c0_i32 = arith.constant 0 : i32
    %c0_i32_0 = arith.constant 0 : i32
    %c0_i32_1 = arith.constant 0 : i32
    return %c0_i32, %c0_i32_0 : i32, i32
  }
  func.func @transform_4(%arg0: i32) -> (i32, i32) {
    %c0_i32 = arith.constant 0 : i32
    %c0_i32_0 = arith.constant 0 : i32
    %c0_i32_1 = arith.constant 0 : i32
    return %c0_i32, %c0_i32_0 : i32, i32
  }
  func.func @transform_5(%arg0: i32) -> (i32, i32) {
    %c0_i32 = arith.constant 0 : i32
    %c0_i32_0 = arith.constant 0 : i32
    %c0_i32_1 = arith.constant 0 : i32
    return %c0_i32, %c0_i32_0 : i32, i32
  }
  func.func @transform_6(%arg0: i32) -> (i32, i32) {
    %c0_i32 = arith.constant 0 : i32
    %c0_i32_0 = arith.constant 0 : i32
    %c0_i32_1 = arith.constant 0 : i32
    return %c0_i32, %c0_i32_0 : i32, i32
  }
  func.func @transform_7(%arg0: i32) -> (i32, i32) {
    %c0_i32 = arith.constant 0 : i32
    %c0_i32_0 = arith.constant 0 : i32
    %c0_i32_1 = arith.constant 0 : i32
    return %c0_i32, %c0_i32_0 : i32, i32
  }
  func.func @transform_8(%arg0: i32) -> (i32, i32) {
    %c0_i32 = arith.constant 0 : i32
    %c0_i32_0 = arith.constant 0 : i32
    %c0_i32_1 = arith.constant 0 : i32
    return %c0_i32, %c0_i32_0 : i32, i32
  }
  func.func @transform_9(%arg0: i32) -> (i32, i32) {
    %c0_i32 = arith.constant 0 : i32
    %c0_i32_0 = arith.constant 0 : i32
    %c0_i32_1 = arith.constant 0 : i32
    return %c0_i32, %c0_i32_0 : i32, i32
  }
  func.func @transform_10(%arg0: i32) -> (i32, i32) {
    %c0_i32 = arith.constant 0 : i32
    %c0_i32_0 = arith.constant 0 : i32
    %c0_i32_1 = arith.constant 0 : i32
    return %c0_i32, %c0_i32_0 : i32, i32
  }
  func.func @transform_11(%arg0: i32) -> (i32, i32) {
    %c0_i32 = arith.constant 0 : i32
    %c0_i32_0 = arith.constant 0 : i32
    %c0_i32_1 = arith.constant 0 : i32
    return %c0_i32, %c0_i32_0 : i32, i32
  }
  func.func @transform_12(%arg0: i32) -> (i32, i32) {
    %c0_i32 = arith.constant 0 : i32
    %c0_i32_0 = arith.constant 0 : i32
    %c0_i32_1 = arith.constant 0 : i32
    return %c0_i32, %c0_i32_0 : i32, i32
  }
  func.func @transform_13(%arg0: i32) -> (i32, i32) {
    %c0_i32 = arith.constant 0 : i32
    %c0_i32_0 = arith.constant 0 : i32
    %c0_i32_1 = arith.constant 0 : i32
    return %c0_i32, %c0_i32_0 : i32, i32
  }
  func.func @transform_14(%arg0: i32) -> (i32, i32) {
    %c0_i32 = arith.constant 0 : i32
    %c0_i32_0 = arith.constant 0 : i32
    %c0_i32_1 = arith.constant 0 : i32
    return %c0_i32, %c0_i32_0 : i32, i32
  }
  func.func @transform_15(%arg0: i32) -> (i32, i32) {
    %c0_i32 = arith.constant 0 : i32
    %c0_i32_0 = arith.constant 0 : i32
    %c0_i32_1 = arith.constant 0 : i32
    return %c0_i32, %c0_i32_0 : i32, i32
  }
  func.func @transform_16(%arg0: i32) -> (i32, i32) {
    %c0_i32 = arith.constant 0 : i32
    %c0_i32_0 = arith.constant 0 : i32
    %c0_i32_1 = arith.constant 0 : i32
    return %c0_i32, %c0_i32_0 : i32, i32
  }
  func.func @transform_17(%arg0: i32) -> (i32, i32) {
    %c0_i32 = arith.constant 0 : i32
    %c0_i32_0 = arith.constant 0 : i32
    %c0_i32_1 = arith.constant 0 : i32
    return %c0_i32, %c0_i32_0 : i32, i32
  }
  func.func @transform_18(%arg0: i32) -> (i32, i32, i32) {
    %c0_i32 = arith.constant 0 : i32
    %c0_i32_0 = arith.constant 0 : i32
    %c0_i32_1 = arith.constant 0 : i32
    return %arg0, %c0_i32, %c0_i32_0 : i32, i32, i32
  }
}

</mosaic_0001>

<llo_original>
// kernel: tpu_custom_call.1
$region0: #{tpu_custom_call.1}
  #allocation0 [shape = 'u32[]', space=smem, size = 0x4, offset = 0x4, fixed_abs, tag = 'smem constant byte address 0x4 - core index']
  #allocation1 [shape = 'u32[144,128]{1,0:T(1,128)}', space=vmem, size = 0x12000, scoped, tag = 'internal scratch']
  %s0 = inlined_call_operand.vmem [shape: bf16[2,8,128], index: 0, kind: input, shape index: {}]
  %s1 = inlined_call_operand.vmem [shape: f32[2,8,1], index: 1, kind: input, shape index: {}]
  %s2 = inlined_call_operand.vmem [shape: f32[1,1,16], index: 2, kind: input, shape index: {}]
  %s3 = inlined_call_operand.hbm [shape: f32[16,16], index: 3, kind: input, shape index: {}]
  %s4 = inlined_call_operand.hbm [shape: bf16[128,384], index: 4, kind: input, shape index: {}]
  %s5 = inlined_call_operand.vmem [shape: f32[1,384], index: 5, kind: input, shape index: {}]
  %s6 = inlined_call_operand.hbm [shape: bf16[128,128], index: 6, kind: input, shape index: {}]
  %s7 = inlined_call_operand.hbm [shape: f32[1,128], index: 7, kind: input, shape index: {}]
  %s8 = inlined_call_operand.hbm [shape: f32[1,128], index: 8, kind: input, shape index: {}]
  %s9 = inlined_call_operand.hbm [shape: f32[1,128], index: 9, kind: input, shape index: {}]
  %s10 = inlined_call_operand.hbm [shape: bf16[128,256], index: 10, kind: input, shape index: {}]
  %s11 = inlined_call_operand.vmem [shape: f32[1,256], index: 11, kind: input, shape index: {}]
  %s12 = inlined_call_operand.hbm [shape: bf16[256,128], index: 12, kind: input, shape index: {}]
  %s13 = inlined_call_operand.hbm [shape: f32[1,128], index: 13, kind: input, shape index: {}]
  %s14 = inlined_call_operand.hbm [shape: f32[1,128], index: 14, kind: input, shape index: {}]
  %s15 = inlined_call_operand.hbm [shape: f32[1,128], index: 15, kind: input, shape index: {}]
  %s16 = inlined_call_operand.vmem [shape: bf16[128,128], index: 16, kind: input, shape index: {}]
  %s17 = inlined_call_operand.vmem [shape: f32[1,128], index: 17, kind: input, shape index: {}]
  %s18 = inlined_call_operand.hbm [shape: f32[1,2,128], index: 18, kind: output, shape index: {}]
  %s19 = sld [smem:[#allocation0]]
  $region126: #{tpu_custom_call.1} parent=0
    _
  %s21 = ssub.s32 1, %s19
  %s22 = scalar_select 0, %s21, %s19
  $region1: #{tpu_custom_call.1} parent=0
    #allocation2 [shape = 'u8[8192]{0}', space=vmem, size = 0x2000, scoped, tag = 'input window, operand 3, single buffered']
    #allocation3 [shape = 's32[1]{0}', space=sflag, size = 0x4, scoped, tag = 'scoped memory for tpu_custom_call.1']
    #allocation4 [shape = 's32[1]{0}', space=sflag, size = 0x4, scoped, tag = 'scoped memory for tpu_custom_call.1']
    #allocation5 [shape = 'u8[98304]{0}', space=vmem, size = 0x18000, scoped, tag = 'input window, operand 4, single buffered']
    #allocation6 [shape = 's32[1]{0}', space=sflag, size = 0x4, scoped, tag = 'scoped memory for tpu_custom_call.1']
    #allocation7 [shape = 'u8[32768]{0}', space=vmem, size = 0x8000, scoped, tag = 'input window, operand 6, single buffered']
    #allocation8 [shape = 'u8[512]{0}', space=vmem, size = 0x400, scoped, tag = 'input window, operand 7, single buffered']
    #allocation9 [shape = 's32[1]{0}', space=sflag, size = 0x4, scoped, tag = 'scoped memory for tpu_custom_call.1']
    #allocation10 [shape = 'u8[512]{0}', space=vmem, size = 0x400, scoped, tag = 'input window, operand 8, single buffered']
    #allocation11 [shape = 'u8[512]{0}', space=vmem, size = 0x400, scoped, tag = 'input window, operand 9, single buffered']
    #allocation12 [shape = 's32[1]{0}', space=sflag, size = 0x4, scoped, tag = 'scoped memory for tpu_custom_call.1']
    #allocation13 [shape = 'u8[65536]{0}', space=vmem, size = 0x10000, scoped, tag = 'input window, operand 10, single buffered']
    #allocation14 [shape = 'u8[65536]{0}', space=vmem, size = 0x10000, scoped, tag = 'input window, operand 12, single buffered']
    #allocation15 [shape = 's32[1]{0}', space=sflag, size = 0x4, scoped, tag = 'scoped memory for tpu_custom_call.1']
    #allocation16 [shape = 'u8[512]{0}', space=vmem, size = 0x400, scoped, tag = 'input window, operand 13, single buffered']
    #allocation17 [shape = 'u8[512]{0}', space=vmem, size = 0x400, scoped, tag = 'input window, operand 14, single buffered']
    #allocation18 [shape = 's32[1]{0}', space=sflag, size = 0x4, scoped, tag = 'scoped memory for tpu_custom_call.1']
    #allocation19 [shape = 'u8[512]{0}', space=vmem, size = 0x400, scoped, tag = 'input window, operand 15, single buffered']
    #allocation20 [shape = 'u8[1024]{0}', space=vmem, size = 0x400, scoped, tag = 'output window, operand 0, single buffered']
    %23 = vsyncpa [#allocation3], 0
    %24 = vsyncpa [#allocation6], 0
    %25 = vsyncpa [#allocation9], 0
    %26 = vsyncpa [#allocation12], 0
    %27 = vsyncpa [#allocation15], 0
    %28 = vsyncpa [#allocation18], 0
    %29 = vsyncpa [#allocation4], 0
    // Predicated region
    $region2: #{tpu_custom_call.1} parent=1 // pred_check
      _
    $region3: #{tpu_custom_call.1} parent=1 // pred_check_branch
      %31 = sbr.rel (0) target = $region5
    $region4: #{tpu_custom_call.1} parent=1 // pred_region
      _
    $region5: #{tpu_custom_call.1} parent=1 // pred_fallthru
      _
    // Predicated region
    $region6: #{tpu_custom_call.1} parent=1 // pred_check
      _
    $region7: #{tpu_custom_call.1} parent=1 // pred_check_branch
      %33 = sbr.rel (0) target = $region9
    $region8: #{tpu_custom_call.1} parent=1 // pred_region
      _
    $region9: #{tpu_custom_call.1} parent=1 // pred_fallthru
      _
    // Predicated region
    $region10: #{tpu_custom_call.1} parent=1 // pred_check
      _
    $region11: #{tpu_custom_call.1} parent=1 // pred_check_branch
      %35 = sbr.rel (0) target = $region13
    $region12: #{tpu_custom_call.1} parent=1 // pred_region
      _
    $region13: #{tpu_custom_call.1} parent=1 // pred_fallthru
      _
    // Predicated region
    $region14: #{tpu_custom_call.1} parent=1 // pred_check
      _
    $region15: #{tpu_custom_call.1} parent=1 // pred_check_branch
      %37 = sbr.rel (0) target = $region17
    $region16: #{tpu_custom_call.1} parent=1 // pred_region
      %s39 = ssub.s32 256, 256
      %40 = vsyncadd [#allocation3], %s39
      %s41 = sshll.u32 [#allocation2], 4
      %s42 = int_to_ptr.vmem [resolvable:$true] %s41
      %47 = dma.hbm_to_vmem [thread:$0]  %s3, 256, %s42, [#allocation3], 128, 128, 8
    $region17: #{tpu_custom_call.1} parent=1 // pred_fallthru
      _
    // Predicated region
    $region18: #{tpu_custom_call.1} parent=1 // pred_check
      _
    $region19: #{tpu_custom_call.1} parent=1 // pred_check_branch
      %49 = sbr.rel (0) target = $region21
    $region20: #{tpu_custom_call.1} parent=1 // pred_region
      %s51 = ssub.s32 3072, 3072
      %52 = vsyncadd [#allocation6], %s51
      %s53 = sshll.u32 [#allocation5], 4
      %s54 = int_to_ptr.vmem [resolvable:$true] %s53
      %59 = dma.hbm_to_vmem [thread:$0]  %s4, 3072, %s54, [#allocation6], 192, 192, 12
    $region21: #{tpu_custom_call.1} parent=1 // pred_fallthru
      _
    // Predicated region
    $region22: #{tpu_custom_call.1} parent=1 // pred_check
      _
    $region23: #{tpu_custom_call.1} parent=1 // pred_check_branch
      %61 = sbr.rel (0) target = $region25
    $region24: #{tpu_custom_call.1} parent=1 // pred_region
      _
    $region25: #{tpu_custom_call.1} parent=1 // pred_fallthru
      _
    // Predicated region
    $region26: #{tpu_custom_call.1} parent=1 // pred_check
      _
    $region27: #{tpu_custom_call.1} parent=1 // pred_check_branch
      %63 = sbr.rel (0) target = $region29
    $region28: #{tpu_custom_call.1} parent=1 // pred_region
      %s65 = ssub.s32 1024, 1024
      %66 = vsyncadd [#allocation6], %s65
      %s67 = sshll.u32 [#allocation7], 4
      %s68 = int_to_ptr.vmem [resolvable:$true] %s67
      %73 = dma.hbm_to_vmem [thread:$0]  %s6, 1024, %s68, [#allocation6], 64, 64, 4
    $region29: #{tpu_custom_call.1} parent=1 // pred_fallthru
      _
    // Predicated region
    $region30: #{tpu_custom_call.1} parent=1 // pred_check
      _
    $region31: #{tpu_custom_call.1} parent=1 // pred_check_branch
      %75 = sbr.rel (0) target = $region33
    $region32: #{tpu_custom_call.1} parent=1 // pred_region
      %s77 = ssub.s32 16, 16
      %78 = vsyncadd [#allocation9], %s77
      %s80 = sshll.u32 [#allocation8], 4
      %s81 = int_to_ptr.vmem [resolvable:$true] %s80
      %83 = dma.hbm_to_vmem [thread:$0]  %s7, 16, %s81, [#allocation9]
    $region33: #{tpu_custom_call.1} parent=1 // pred_fallthru
      _
    // Predicated region
    $region34: #{tpu_custom_call.1} parent=1 // pred_check
      _
    $region35: #{tpu_custom_call.1} parent=1 // pred_check_branch
      %85 = sbr.rel (0) target = $region37
    $region36: #{tpu_custom_call.1} parent=1 // pred_region
      %s87 = ssub.s32 16, 16
      %88 = vsyncadd [#allocation9], %s87
      %s90 = sshll.u32 [#allocation10], 4
      %s91 = int_to_ptr.vmem [resolvable:$true] %s90
      %93 = dma.hbm_to_vmem [thread:$0]  %s8, 16, %s91, [#allocation9]
    $region37: #{tpu_custom_call.1} parent=1 // pred_fallthru
      _
    // Predicated region
    $region38: #{tpu_custom_call.1} parent=1 // pred_check
      _
    $region39: #{tpu_custom_call.1} parent=1 // pred_check_branch
      %95 = sbr.rel (0) target = $region41
    $region40: #{tpu_custom_call.1} parent=1 // pred_region
      %s97 = ssub.s32 16, 16
      %98 = vsyncadd [#allocation12], %s97
      %s100 = sshll.u32 [#allocation11], 4
      %s101 = int_to_ptr.vmem [resolvable:$true] %s100
      %103 = dma.hbm_to_vmem [thread:$0]  %s9, 16, %s101, [#allocation12]
    $region41: #{tpu_custom_call.1} parent=1 // pred_fallthru
      _
    // Predicated region
    $region42: #{tpu_custom_call.1} parent=1 // pred_check
      _
    $region43: #{tpu_custom_call.1} parent=1 // pred_check_branch
      %105 = sbr.rel (0) target = $region45
    $region44: #{tpu_custom_call.1} parent=1 // pred_region
      %s107 = ssub.s32 2048, 2048
      %108 = vsyncadd [#allocation12], %s107
      %s109 = sshll.u32 [#allocation13], 4
      %s110 = int_to_ptr.vmem [resolvable:$true] %s109
      %115 = dma.hbm_to_vmem [thread:$0]  %s10, 2048, %s110, [#allocation12], 128, 128, 8
    $region45: #{tpu_custom_call.1} parent=1 // pred_fallthru
      _
    // Predicated region
    $region46: #{tpu_custom_call.1} parent=1 // pred_check
      _
    $region47: #{tpu_custom_call.1} parent=1 // pred_check_branch
      %117 = sbr.rel (0) target = $region49
    $region48: #{tpu_custom_call.1} parent=1 // pred_region
      _
    $region49: #{tpu_custom_call.1} parent=1 // pred_fallthru
      _
    // Predicated region
    $region50: #{tpu_custom_call.1} parent=1 // pred_check
      _
    $region51: #{tpu_custom_call.1} parent=1 // pred_check_branch
      %119 = sbr.rel (0) target = $region53
    $region52: #{tpu_custom_call.1} parent=1 // pred_region
      %s121 = ssub.s32 2048, 2048
      %122 = vsyncadd [#allocation15], %s121
      %s123 = sshll.u32 [#allocation14], 4
      %s124 = int_to_ptr.vmem [resolvable:$true] %s123
      %129 = dma.hbm_to_vmem [thread:$0]  %s12, 2048, %s124, [#allocation15], 64, 64, 4
    $region53: #{tpu_custom_call.1} parent=1 // pred_fallthru
      _
    // Predicated region
    $region54: #{tpu_custom_call.1} parent=1 // pred_check
      _
    $region55: #{tpu_custom_call.1} parent=1 // pred_check_branch
      %131 = sbr.rel (0) target = $region57
    $region56: #{tpu_custom_call.1} parent=1 // pred_region
      %s133 = ssub.s32 16, 16
      %134 = vsyncadd [#allocation15], %s133
      %s136 = sshll.u32 [#allocation16], 4
      %s137 = int_to_ptr.vmem [resolvable:$true] %s136
      %139 = dma.hbm_to_vmem [thread:$0]  %s13, 16, %s137, [#allocation15]
    $region57: #{tpu_custom_call.1} parent=1 // pred_fallthru
      _
    // Predicated region
    $region58: #{tpu_custom_call.1} parent=1 // pred_check
      _
    $region59: #{tpu_custom_call.1} parent=1 // pred_check_branch
      %141 = sbr.rel (0) target = $region61
    $region60: #{tpu_custom_call.1} parent=1 // pred_region
      %s143 = ssub.s32 16, 16
      %144 = vsyncadd [#allocation18], %s143
      %s146 = sshll.u32 [#allocation17], 4
      %s147 = int_to_ptr.vmem [resolvable:$true] %s146
      %149 = dma.hbm_to_vmem [thread:$0]  %s14, 16, %s147, [#allocation18]
    $region61: #{tpu_custom_call.1} parent=1 // pred_fallthru
      _
    // Predicated region
    $region62: #{tpu_custom_call.1} parent=1 // pred_check
      _
    $region63: #{tpu_custom_call.1} parent=1 // pred_check_branch
      %151 = sbr.rel (0) target = $region65
    $region64: #{tpu_custom_call.1} parent=1 // pred_region
      %s153 = ssub.s32 16, 16
      %154 = vsyncadd [#allocation18], %s153
      %s156 = sshll.u32 [#allocation19], 4
      %s157 = int_to_ptr.vmem [resolvable:$true] %s156
      %159 = dma.hbm_to_vmem [thread:$0]  %s15, 16, %s157, [#allocation18]
    $region65: #{tpu_custom_call.1} parent=1 // pred_fallthru
      _
    // Predicated region
    $region66: #{tpu_custom_call.1} parent=1 // pred_check
      _
    $region67: #{tpu_custom_call.1} parent=1 // pred_check_branch
      %161 = sbr.rel (0) target = $region69
    $region68: #{tpu_custom_call.1} parent=1 // pred_region
      _
    $region69: #{tpu_custom_call.1} parent=1 // pred_fallthru
      _
    // Predicated region
    $region70: #{tpu_custom_call.1} parent=1 // pred_check
      _
    $region71: #{tpu_custom_call.1} parent=1 // pred_check_branch
      %163 = sbr.rel (0) target = $region73
    $region72: #{tpu_custom_call.1} parent=1 // pred_region
      _
    $region73: #{tpu_custom_call.1} parent=1 // pred_fallthru
      _
    // Predicated region
    $region74: #{tpu_custom_call.1} parent=1 // pred_check
      _
    $region75: #{tpu_custom_call.1} parent=1 // pred_check_branch
      %165 = sbr.rel (0) target = $region77
    $region76: #{tpu_custom_call.1} parent=1 // pred_region
      %166 = dma.done [#allocation3], 256
    $region77: #{tpu_custom_call.1} parent=1 // pred_fallthru
      _
    // Predicated region
    $region78: #{tpu_custom_call.1} parent=1 // pred_check
      _
    $region79: #{tpu_custom_call.1} parent=1 // pred_check_branch
      %168 = sbr.rel (0) target = $region81
    $region80: #{tpu_custom_call.1} parent=1 // pred_region
      %169 = dma.done [#allocation6], 3072
    $region81: #{tpu_custom_call.1} parent=1 // pred_fallthru
      _
    // Predicated region
    $region82: #{tpu_custom_call.1} parent=1 // pred_check
      _
    $region83: #{tpu_custom_call.1} parent=1 // pred_check_branch
      %171 = sbr.rel (0) target = $region85
    $region84: #{tpu_custom_call.1} parent=1 // pred_region
      %172 = dma.done [#allocation6], 1024
    $region85: #{tpu_custom_call.1} parent=1 // pred_fallthru
      _
    // Predicated region
    $region86: #{tpu_custom_call.1} parent=1 // pred_check
      _
    $region87: #{tpu_custom_call.1} parent=1 // pred_check_branch
      %174 = sbr.rel (0) target = $region89
    $region88: #{tpu_custom_call.1} parent=1 // pred_region
      %175 = dma.done [#allocation9], 16
    $region89: #{tpu_custom_call.1} parent=1 // pred_fallthru
      _
    // Predicated region
    $region90: #{tpu_custom_call.1} parent=1 // pred_check
      _
    $region91: #{tpu_custom_call.1} parent=1 // pred_check_branch
      %177 = sbr.rel (0) target = $region93
    $region92: #{tpu_custom_call.1} parent=1 // pred_region
      %178 = dma.done [#allocation9], 16
    $region93: #{tpu_custom_call.1} parent=1 // pred_fallthru
      _
    // Predicated region
    $region94: #{tpu_custom_call.1} parent=1 // pred_check
      _
    $region95: #{tpu_custom_call.1} parent=1 // pred_check_branch
      %180 = sbr.rel (0) target = $region97
    $region96: #{tpu_custom_call.1} parent=1 // pred_region
      %181 = dma.done [#allocation12], 16
    $region97: #{tpu_custom_call.1} parent=1 // pred_fallthru
      _
    // Predicated region
    $region98: #{tpu_custom_call.1} parent=1 // pred_check
      _
    $region99: #{tpu_custom_call.1} parent=1 // pred_check_branch
      %183 = sbr.rel (0) target = $region101
    $region100: #{tpu_custom_call.1} parent=1 // pred_region
      %184 = dma.done [#allocation12], 2048
    $region101: #{tpu_custom_call.1} parent=1 // pred_fallthru
      _
    // Predicated region
    $region102: #{tpu_custom_call.1} parent=1 // pred_check
      _
    $region103: #{tpu_custom_call.1} parent=1 // pred_check_branch
      %186 = sbr.rel (0) target = $region105
    $region104: #{tpu_custom_call.1} parent=1 // pred_region
      %187 = dma.done [#allocation15], 2048
    $region105: #{tpu_custom_call.1} parent=1 // pred_fallthru
      _
    // Predicated region
    $region106: #{tpu_custom_call.1} parent=1 // pred_check
      _
    $region107: #{tpu_custom_call.1} parent=1 // pred_check_branch
      %189 = sbr.rel (0) target = $region109
    $region108: #{tpu_custom_call.1} parent=1 // pred_region
      %190 = dma.done [#allocation15], 16
    $region109: #{tpu_custom_call.1} parent=1 // pred_fallthru
      _
    // Predicated region
    $region110: #{tpu_custom_call.1} parent=1 // pred_check
      _
    $region111: #{tpu_custom_call.1} parent=1 // pred_check_branch
      %192 = sbr.rel (0) target = $region113
    $region112: #{tpu_custom_call.1} parent=1 // pred_region
      %193 = dma.done [#allocation18], 16
    $region113: #{tpu_custom_call.1} parent=1 // pred_fallthru
      _
    // Predicated region
    $region114: #{tpu_custom_call.1} parent=1 // pred_check
      _
    $region115: #{tpu_custom_call.1} parent=1 // pred_check_branch
      %195 = sbr.rel (0) target = $region117
    $region116: #{tpu_custom_call.1} parent=1 // pred_region
      %196 = dma.done [#allocation18], 16
    $region117: #{tpu_custom_call.1} parent=1 // pred_fallthru
      _
    %v198 = vld [vmem:[%s0] sm:$0xf]
    %v199 = vld [vmem:[%s0 + $0x4] sm:$0xf]
    %v200 = vld [vmem:[#allocation5] sm:$0xff]
    %v201 = vld [vmem:[#allocation5 + $0x8] sm:$0xf]
    %v202 = vld [vmem:[#allocation5 + $0xc] sm:$0xff]
    %v203 = vld [vmem:[#allocation5 + $0x14] sm:$0xf]
    %v204 = vld [vmem:[#allocation5 + $0x18] sm:$0xff]
    %v205 = vld [vmem:[#allocation5 + $0x20] sm:$0xf]
    %v206 = vld [vmem:[#allocation5 + $0x24] sm:$0xff]
    %v207 = vld [vmem:[#allocation5 + $0x2c] sm:$0xf]
    %v208 = vld [vmem:[#allocation5 + $0x30] sm:$0xff]
    %v209 = vld [vmem:[#allocation5 + $0x38] sm:$0xf]
    %v210 = vld [vmem:[#allocation5 + $0x3c] sm:$0xff]
    %v211 = vld [vmem:[#allocation5 + $0x44] sm:$0xf]
    %v212 = vld [vmem:[#allocation5 + $0x48] sm:$0xff]
    %v213 = vld [vmem:[#allocation5 + $0x50] sm:$0xf]
    %v214 = vld [vmem:[#allocation5 + $0x54] sm:$0xff]
    %v215 = vld [vmem:[#allocation5 + $0x5c] sm:$0xf]
    %v216 = vld [vmem:[#allocation5 + $0x60] sm:$0xff]
    %v217 = vld [vmem:[#allocation5 + $0x68] sm:$0xf]
    %v218 = vld [vmem:[#allocation5 + $0x6c] sm:$0xff]
    %v219 = vld [vmem:[#allocation5 + $0x74] sm:$0xf]
    %v220 = vld [vmem:[#allocation5 + $0x78] sm:$0xff]
    %v221 = vld [vmem:[#allocation5 + $0x80] sm:$0xf]
    %v222 = vld [vmem:[#allocation5 + $0x84] sm:$0xff]
    %v223 = vld [vmem:[#allocation5 + $0x8c] sm:$0xf]
    %v224 = vld [vmem:[#allocation5 + $0x90] sm:$0xff]
    %v225 = vld [vmem:[#allocation5 + $0x98] sm:$0xf]
    %v226 = vld [vmem:[#allocation5 + $0x9c] sm:$0xff]
    %v227 = vld [vmem:[#allocation5 + $0xa4] sm:$0xf]
    %v228 = vld [vmem:[#allocation5 + $0xa8] sm:$0xff]
    %v229 = vld [vmem:[#allocation5 + $0xb0] sm:$0xf]
    %v230 = vld [vmem:[#allocation5 + $0xb4] sm:$0xff]
    %v231 = vld [vmem:[#allocation5 + $0xbc] sm:$0xf]
    %v232 = vld [vmem:[%s5] sm:$0x7]
    %v234 = vlaneseq
    %v235 = vshrl.u32 %v234, 7
    %v236 = vsub.s32 0, %v235
    %v237 = vrot.slane %v232, %v236
    %v238 = vlaneseq
    %v239 = vshrl.u32 %v238, 7
    %v240 = vsub.s32 1, %v239
    %v241 = vrot.slane %v232, %v240
    %v242 = vlaneseq
    %v243 = vshrl.u32 %v242, 7
    %v244 = vsub.s32 2, %v243
    %v245 = vrot.slane %v232, %v244
    %v251 = vunpack.c.l.b16 %v198
    %v252 = vunpack.c.l.b16 %v199
    %v253 = vpack.c.b16 %v252, %v251
    %v287 = vunpack.c.l.b16 %v200
    %v288 = vunpack.c.h.b16 %v200
    %v289 = vunpack.c.l.b16 %v201
    %v290 = vunpack.c.l.b16 %v202
    %v291 = vunpack.c.h.b16 %v202
    %v292 = vunpack.c.l.b16 %v203
    %v293 = vunpack.c.l.b16 %v204
    %v294 = vunpack.c.h.b16 %v204
    %v295 = vunpack.c.l.b16 %v205
    %v296 = vunpack.c.l.b16 %v206
    %v297 = vunpack.c.h.b16 %v206
    %v298 = vunpack.c.l.b16 %v207
    %v299 = vunpack.c.l.b16 %v208
    %v300 = vunpack.c.h.b16 %v208
    %v301 = vunpack.c.l.b16 %v209
    %v302 = vunpack.c.l.b16 %v210
    %v303 = vunpack.c.h.b16 %v210
    %v304 = vunpack.c.l.b16 %v211
    %v305 = vunpack.c.l.b16 %v212
    %v306 = vunpack.c.h.b16 %v212
    %v307 = vunpack.c.l.b16 %v213
    %v308 = vunpack.c.l.b16 %v214
    %v309 = vunpack.c.h.b16 %v214
    %v310 = vunpack.c.l.b16 %v215
    %v311 = vunpack.c.l.b16 %v216
    %v312 = vunpack.c.h.b16 %v216
    %v313 = vunpack.c.l.b16 %v217
    %v314 = vunpack.c.l.b16 %v218
    %v315 = vunpack.c.h.b16 %v218
    %v316 = vunpack.c.l.b16 %v219
    %v317 = vunpack.c.l.b16 %v220
    %v318 = vunpack.c.h.b16 %v220
    %v319 = vunpack.c.l.b16 %v221
    %v320 = vunpack.c.l.b16 %v222
    %v321 = vunpack.c.h.b16 %v222
    %v322 = vunpack.c.l.b16 %v223
    %v323 = vunpack.c.l.b16 %v224
    %v324 = vunpack.c.h.b16 %v224
    %v325 = vunpack.c.l.b16 %v225
    %v326 = vunpack.c.l.b16 %v226
    %v327 = vunpack.c.h.b16 %v226
    %v328 = vunpack.c.l.b16 %v227
    %v329 = vunpack.c.l.b16 %v228
    %v330 = vunpack.c.h.b16 %v228
    %v331 = vunpack.c.l.b16 %v229
    %v332 = vunpack.c.l.b16 %v230
    %v333 = vunpack.c.h.b16 %v230
    %v334 = vunpack.c.l.b16 %v231
    %v335 = vpack.c.b16 %v290, %v287
    %v336 = vpack.c.b16 %v291, %v288
    %v337 = vpack.c.b16 %v292, %v289
    %v338 = vpack.c.b16 %v296, %v293
    %v339 = vpack.c.b16 %v297, %v294
    %v340 = vpack.c.b16 %v298, %v295
    %v341 = vpack.c.b16 %v302, %v299
    %v342 = vpack.c.b16 %v303, %v300
    %v343 = vpack.c.b16 %v304, %v301
    %v344 = vpack.c.b16 %v308, %v305
    %v345 = vpack.c.b16 %v309, %v306
    %v346 = vpack.c.b16 %v310, %v307
    %v347 = vpack.c.b16 %v314, %v311
    %v348 = vpack.c.b16 %v315, %v312
    %v349 = vpack.c.b16 %v316, %v313
    %v350 = vpack.c.b16 %v320, %v317
    %v351 = vpack.c.b16 %v321, %v318
    %v352 = vpack.c.b16 %v322, %v319
    %v353 = vpack.c.b16 %v326, %v323
    %v354 = vpack.c.b16 %v327, %v324
    %v355 = vpack.c.b16 %v328, %v325
    %v356 = vpack.c.b16 %v332, %v329
    %v357 = vpack.c.b16 %v333, %v330
    %v358 = vpack.c.b16 %v334, %v331
    %383 = vmatprep.subr.bf16.mxu0 %v336
    %384 = vmatpush1.bf16.msra.mxu0 %v335
    %385 = vmatprep.subr.bf16.mxu0 %v339
    %386 = vmatpush1.bf16.msra.mxu0 %v338
    %387 = vmatprep.subr.bf16.mxu0 %v342
    %388 = vmatpush1.bf16.msra.mxu0 %v341
    %389 = vmatprep.subr.bf16.mxu0 %v345
    %390 = vmatpush1.bf16.msra.mxu0 %v344
    %391 = vmatprep.subr.bf16.mxu0 %v348
    %392 = vmatpush1.bf16.msra.mxu0 %v347
    %393 = vmatprep.subr.bf16.mxu0 %v351
    %394 = vmatpush1.bf16.msra.mxu0 %v350
    %395 = vmatprep.subr.bf16.mxu0 %v354
    %396 = vmatpush1.bf16.msra.mxu0 %v353
    %397 = vmatprep.subr.bf16.mxu0 %v357
    %398 = vmatpush1.bf16.msra.mxu0 %v356
    %399 = vmatprep.subr.bf16.mxu0 0
    %400 = vmatpush1.bf16.msra.mxu0 0
    %401 = vmatprep.subr.bf16.mxu0 0
    %402 = vmatpush1.bf16.msra.mxu0 0
    %403 = vmatprep.subr.bf16.mxu0 0
    %404 = vmatpush1.bf16.msra.mxu0 0
    %405 = vmatprep.subr.bf16.mxu0 0
    %406 = vmatpush1.bf16.msra.mxu0 0
    %407 = vmatprep.subr.bf16.mxu0 0
    %408 = vmatpush1.bf16.msra.mxu0 0
    %409 = vmatprep.subr.bf16.mxu0 0
    %410 = vmatpush1.bf16.msra.mxu0 0
    %411 = vmatprep.subr.bf16.mxu0 0
    %412 = vmatpush1.bf16.msra.mxu0 0
    %413 = vmatprep.subr.bf16.mxu0 0
    %414 = vmatpush1.bf16.msra.mxu0 0
    %415 = vmatprep.mubr.bf16.mxu0 0
    %416 = vmatmul.mubr.bf16.gmra.mrb[0].mxu0 %v253
    %v417 = vpop.f32.mrb[0].mxu0
    %v418 = vadd.f32 %v237, %v417
    %v419 = vpop.f32.mrb[0].mxu0
    %v420 = vadd.f32 %v241, %v419
    %v421 = vpop.f32.mrb[0].mxu0
    %v422 = vadd.f32 %v237, %v421
    %v423 = vpop.f32.mrb[0].mxu0
    %v424 = vadd.f32 %v241, %v423
    %425 = vdwg.mxu0
    %426 = vmatprep.subr.bf16.mxu0 0
    %427 = vmatpush1.bf16.msra.mxu0 %v337
    %428 = vmatprep.subr.bf16.mxu0 0
    %429 = vmatpush1.bf16.msra.mxu0 %v340
    %430 = vmatprep.subr.bf16.mxu0 0
    %431 = vmatpush1.bf16.msra.mxu0 %v343
    %432 = vmatprep.subr.bf16.mxu0 0
    %433 = vmatpush1.bf16.msra.mxu0 %v346
    %434 = vmatprep.subr.bf16.mxu0 0
    %435 = vmatpush1.bf16.msra.mxu0 %v349
    %436 = vmatprep.subr.bf16.mxu0 0
    %437 = vmatpush1.bf16.msra.mxu0 %v352
    %438 = vmatprep.subr.bf16.mxu0 0
    %439 = vmatpush1.bf16.msra.mxu0 %v355
    %440 = vmatprep.subr.bf16.mxu0 0
    %441 = vmatpush1.bf16.msra.mxu0 %v358
    %442 = vmatprep.subr.bf16.mxu0 0
    %443 = vmatpush1.bf16.msra.mxu0 0
    %444 = vmatprep.subr.bf16.mxu0 0
    %445 = vmatpush1.bf16.msra.mxu0 0
    %446 = vmatprep.subr.bf16.mxu0 0
    %447 = vmatpush1.bf16.msra.mxu0 0
    %448 = vmatprep.subr.bf16.mxu0 0
    %449 = vmatpush1.bf16.msra.mxu0 0
    %450 = vmatprep.subr.bf16.mxu0 0
    %451 = vmatpush1.bf16.msra.mxu0 0
    %452 = vmatprep.subr.bf16.mxu0 0
    %453 = vmatpush1.bf16.msra.mxu0 0
    %454 = vmatprep.subr.bf16.mxu0 0
    %455 = vmatpush1.bf16.msra.mxu0 0
    %456 = vmatprep.subr.bf16.mxu0 0
    %457 = vmatpush1.bf16.msra.mxu0 0
    %458 = vmatprep.mubr.bf16.mxu0 0
    %459 = vmatmul.mubr.bf16.gmra.mrb[0].mxu0 %v253
    %v460 = vpop.f32.mrb[0].mxu0
    %v461 = vadd.f32 %v245, %v460
    %v462 = vpop.f32.mrb[0].mxu0
    %v463 = vpop.f32.mrb[0].mxu0
    %v464 = vadd.f32 %v245, %v463
    %v465 = vpop.f32.mrb[0].mxu0
    %466 = vdwg.mxu0
    %v467 = vpack.c.bf16 %v422, %v418
    %v468 = vpack.c.bf16 %v424, %v420
    %v469 = vpack.c.bf16 %v464, %v461
    %v470 = vld [vmem:[#allocation2] sm:$0xff]
    %v471 = vld [vmem:[#allocation2 + $0x8] sm:$0xff]
    %472 = vmatprep.subr.bf16.mxu0 0
    %473 = vmatpush1.bf16.xpose.msra.mxu0 %v468
    %474 = vmatprep.subr.bf16.mxu0 0
    %475 = vmatpush1.bf16.xpose.msra.mxu0 0
    %476 = vmatprep.subr.bf16.mxu0 0
    %477 = vmatpush1.bf16.xpose.msra.mxu0 0
    %478 = vmatprep.subr.bf16.mxu0 0
    %479 = vmatpush1.bf16.xpose.msra.mxu0 0
    %480 = vmatprep.subr.bf16.mxu0 0
    %481 = vmatpush1.bf16.xpose.msra.mxu0 0
    %482 = vmatprep.subr.bf16.mxu0 0
    %483 = vmatpush1.bf16.xpose.msra.mxu0 0
    %484 = vmatprep.subr.bf16.mxu0 0
    %485 = vmatpush1.bf16.xpose.msra.mxu0 0
    %486 = vmatprep.subr.bf16.mxu0 0
    %487 = vmatpush1.bf16.xpose.msra.mxu0 0
    %488 = vmatprep.subr.bf16.mxu0 0
    %489 = vmatpush1.bf16.xpose.msra.mxu0 0
    %490 = vmatprep.subr.bf16.mxu0 0
    %491 = vmatpush1.bf16.xpose.msra.mxu0 0
    %492 = vmatprep.subr.bf16.mxu0 0
    %493 = vmatpush1.bf16.xpose.msra.mxu0 0
    %494 = vmatprep.subr.bf16.mxu0 0
    %495 = vmatpush1.bf16.xpose.msra.mxu0 0
    %496 = vmatprep.subr.bf16.mxu0 0
    %497 = vmatpush1.bf16.xpose.msra.mxu0 0
    %498 = vmatprep.subr.bf16.mxu0 0
    %499 = vmatpush1.bf16.xpose.msra.mxu0 0
    %500 = vmatprep.subr.bf16.mxu0 0
    %501 = vmatpush1.bf16.xpose.msra.mxu0 0
    %502 = vmatprep.subr.bf16.mxu0 0
    %503 = vmatpush1.bf16.xpose.msra.mxu0 0
    %504 = vmatprep.mubr.bf16.mxu0 0
    %505 = vmatmul.mubr.bf16.gmra.mrb[0].mxu0 %v467
    %v506 = vpop.f32.mrb[0].mxu0
    %v507 = vadd.f32 %v470, %v506
    %v508 = vpop.f32.mrb[0].mxu0
    %v509 = vpop.f32.mrb[0].mxu0
    %v510 = vadd.f32 %v471, %v509
    %v511 = vpop.f32.mrb[0].mxu0
    %512 = vdwg.mxu0
    %v513 = vld [vmem:[%s2] sm:$0x1]
    %v515 = vlaneseq
    %v516 = vshrl.u32 %v515, 7
    %v517 = vsub.s32 0, %v516
    %v518 = vrot.slane %v513, %v517
    %v520 = vadd.f32 %v507, %v518
    %v521 = vadd.f32 %v510, %v518
    %vm522 = vcmask 130048
    %v523 = vsel %vm522, %v520, -inf
    %524 = vmax.xlane.f32.xlu0 %v523
    %v525 = vpop.xlane.xlu0 %524
    %v526 = vsel %vm522, %v521, -inf
    %527 = vmax.xlane.f32.xlu0 %v526
    %v528 = vpop.xlane.xlu0 %527
    %v529 = vsub.f32 %v520, %v525
    %v530 = vsub.f32 %v521, %v528
    %v531 = vmul.f32 %v529, 1.442695
    %v532 = vpow.pop %v531
    %v533 = vmul.f32 %v530, 1.442695
    %v534 = vpow.pop %v533
    %v535 = vsel %vm522, %v532, 0.0
    %536 = vadd.xlane.f32.xlu0 %v535
    %v537 = vpop.xlane.xlu0 %536
    %v538 = vsel %vm522, %v534, 0.0
    %539 = vadd.xlane.f32.xlu0 %v538
    %v540 = vpop.xlane.xlu0 %539
    %v541 = vrcp.pop %v537
    %v542 = vrcp.pop %v540
    %v543 = vmul.f32 %v532, %v541
    %v544 = vmul.f32 %v534, %v542
    %v545 = vpack.c.bf16 %v544, %v543
    %v547 = vsel %vm522, %v545, 0
    %549 = vmatprep.subr.bf16.mxu0 0
    %550 = vmatpush1.bf16.msra.mxu0 %v469
    %551 = vmatprep.subr.bf16.mxu0 0
    %552 = vmatpush1.bf16.msra.mxu0 0
    %553 = vmatprep.subr.bf16.mxu0 0
    %554 = vmatpush1.bf16.msra.mxu0 0
    %555 = vmatprep.subr.bf16.mxu0 0
    %556 = vmatpush1.bf16.msra.mxu0 0
    %557 = vmatprep.subr.bf16.mxu0 0
    %558 = vmatpush1.bf16.msra.mxu0 0
    %559 = vmatprep.subr.bf16.mxu0 0
    %560 = vmatpush1.bf16.msra.mxu0 0
    %561 = vmatprep.subr.bf16.mxu0 0
    %562 = vmatpush1.bf16.msra.mxu0 0
    %563 = vmatprep.subr.bf16.mxu0 0
    %564 = vmatpush1.bf16.msra.mxu0 0
    %565 = vmatprep.subr.bf16.mxu0 0
    %566 = vmatpush1.bf16.msra.mxu0 0
    %567 = vmatprep.subr.bf16.mxu0 0
    %568 = vmatpush1.bf16.msra.mxu0 0
    %569 = vmatprep.subr.bf16.mxu0 0
    %570 = vmatpush1.bf16.msra.mxu0 0
    %571 = vmatprep.subr.bf16.mxu0 0
    %572 = vmatpush1.bf16.msra.mxu0 0
    %573 = vmatprep.subr.bf16.mxu0 0
    %574 = vmatpush1.bf16.msra.mxu0 0
    %575 = vmatprep.subr.bf16.mxu0 0
    %576 = vmatpush1.bf16.msra.mxu0 0
    %577 = vmatprep.subr.bf16.mxu0 0
    %578 = vmatpush1.bf16.msra.mxu0 0
    %579 = vmatprep.subr.bf16.mxu0 0
    %580 = vmatpush1.bf16.msra.mxu0 0
    %581 = vmatprep.mubr.bf16.mxu0 0
    %582 = vmatmul.mubr.bf16.gmra.mrb[0].mxu0 %v547
    %v583 = vpop.f32.mrb[0].mxu0
    %v584 = vadd.f32 0.0, %v583
    %v585 = vpop.f32.mrb[0].mxu0
    %v586 = vpop.f32.mrb[0].mxu0
    %v587 = vadd.f32 0.0, %v586
    %v588 = vpop.f32.mrb[0].mxu0
    %589 = vdwg.mxu0
    %v590 = vpack.c.bf16 %v587, %v584
    %v591 = vld [vmem:[#allocation7] sm:$0xf]
    %v592 = vld [vmem:[#allocation7 + $0x4] sm:$0xf]
    %v593 = vld [vmem:[#allocation7 + $0x8] sm:$0xf]
    %v594 = vld [vmem:[#allocation7 + $0xc] sm:$0xf]
    %v595 = vld [vmem:[#allocation7 + $0x10] sm:$0xf]
    %v596 = vld [vmem:[#allocation7 + $0x14] sm:$0xf]
    %v597 = vld [vmem:[#allocation7 + $0x18] sm:$0xf]
    %v598 = vld [vmem:[#allocation7 + $0x1c] sm:$0xf]
    %v599 = vld [vmem:[#allocation7 + $0x20] sm:$0xf]
    %v600 = vld [vmem:[#allocation7 + $0x24] sm:$0xf]
    %v601 = vld [vmem:[#allocation7 + $0x28] sm:$0xf]
    %v602 = vld [vmem:[#allocation7 + $0x2c] sm:$0xf]
    %v603 = vld [vmem:[#allocation7 + $0x30] sm:$0xf]
    %v604 = vld [vmem:[#allocation7 + $0x34] sm:$0xf]
    %v605 = vld [vmem:[#allocation7 + $0x38] sm:$0xf]
    %v606 = vld [vmem:[#allocation7 + $0x3c] sm:$0xf]
    %v607 = vld [vmem:[#allocation8] sm:$0x1]
    %v609 = vlaneseq
    %v610 = vshrl.u32 %v609, 7
    %v611 = vsub.s32 0, %v610
    %v612 = vrot.slane %v607, %v611
    %v630 = vunpack.c.l.b16 %v591
    %v631 = vunpack.c.l.b16 %v592
    %v632 = vunpack.c.l.b16 %v593
    %v633 = vunpack.c.l.b16 %v594
    %v634 = vunpack.c.l.b16 %v595
    %v635 = vunpack.c.l.b16 %v596
    %v636 = vunpack.c.l.b16 %v597
    %v637 = vunpack.c.l.b16 %v598
    %v638 = vunpack.c.l.b16 %v599
    %v639 = vunpack.c.l.b16 %v600
    %v640 = vunpack.c.l.b16 %v601
    %v641 = vunpack.c.l.b16 %v602
    %v642 = vunpack.c.l.b16 %v603
    %v643 = vunpack.c.l.b16 %v604
    %v644 = vunpack.c.l.b16 %v605
    %v645 = vunpack.c.l.b16 %v606
    %v646 = vpack.c.b16 %v631, %v630
    %v647 = vpack.c.b16 %v633, %v632
    %v648 = vpack.c.b16 %v635, %v634
    %v649 = vpack.c.b16 %v637, %v636
    %v650 = vpack.c.b16 %v639, %v638
    %v651 = vpack.c.b16 %v641, %v640
    %v652 = vpack.c.b16 %v643, %v642
    %v653 = vpack.c.b16 %v645, %v644
    %662 = vmatprep.subr.bf16.mxu0 0
    %663 = vmatpush1.bf16.msra.mxu0 %v646
    %664 = vmatprep.subr.bf16.mxu0 0
    %665 = vmatpush1.bf16.msra.mxu0 %v647
    %666 = vmatprep.subr.bf16.mxu0 0
    %667 = vmatpush1.bf16.msra.mxu0 %v648
    %668 = vmatprep.subr.bf16.mxu0 0
    %669 = vmatpush1.bf16.msra.mxu0 %v649
    %670 = vmatprep.subr.bf16.mxu0 0
    %671 = vmatpush1.bf16.msra.mxu0 %v650
    %672 = vmatprep.subr.bf16.mxu0 0
    %673 = vmatpush1.bf16.msra.mxu0 %v651
    %674 = vmatprep.subr.bf16.mxu0 0
    %675 = vmatpush1.bf16.msra.mxu0 %v652
    %676 = vmatprep.subr.bf16.mxu0 0
    %677 = vmatpush1.bf16.msra.mxu0 %v653
    %678 = vmatprep.subr.bf16.mxu0 0
    %679 = vmatpush1.bf16.msra.mxu0 0
    %680 = vmatprep.subr.bf16.mxu0 0
    %681 = vmatpush1.bf16.msra.mxu0 0
    %682 = vmatprep.subr.bf16.mxu0 0
    %683 = vmatpush1.bf16.msra.mxu0 0
    %684 = vmatprep.subr.bf16.mxu0 0
    %685 = vmatpush1.bf16.msra.mxu0 0
    %686 = vmatprep.subr.bf16.mxu0 0
    %687 = vmatpush1.bf16.msra.mxu0 0
    %688 = vmatprep.subr.bf16.mxu0 0
    %689 = vmatpush1.bf16.msra.mxu0 0
    %690 = vmatprep.subr.bf16.mxu0 0
    %691 = vmatpush1.bf16.msra.mxu0 0
    %692 = vmatprep.subr.bf16.mxu0 0
    %693 = vmatpush1.bf16.msra.mxu0 0
    %694 = vmatprep.mubr.bf16.mxu0 0
    %695 = vmatmul.mubr.bf16.gmra.mrb[0].mxu0 %v590
    %v696 = vpop.f32.mrb[0].mxu0
    %v697 = vadd.f32 %v612, %v696
    %v698 = vpop.f32.mrb[0].mxu0
    %v699 = vpop.f32.mrb[0].mxu0
    %v700 = vadd.f32 %v612, %v699
    %v701 = vpop.f32.mrb[0].mxu0
    %702 = vdwg.mxu0
    %v703 = vunpack.c.l.bf16 %v198
    %v704 = vunpack.c.l.bf16 %v199
    %v705 = vadd.f32 %v703, %v697
    %v706 = vadd.f32 %v704, %v700
    %v707 = vld [vmem:[#allocation10] sm:$0x1]
    %v708 = vld [vmem:[#allocation11] sm:$0x1]
    %709 = vadd.xlane.f32.xlu0 %v705
    %v710 = vpop.xlane.xlu0 %709
    %711 = vadd.xlane.f32.xlu0 %v706
    %v712 = vpop.xlane.xlu0 %711
    %v713 = vrcp.pop 128.0
    %v714 = vmul.f32 %v710, %v713
    %v715 = vmul.f32 %v712, %v713
    %v716 = vsub.f32 %v705, %v714
    %v717 = vsub.f32 %v706, %v715
    %v718 = vmul.f32 %v716, %v716
    %v719 = vmul.f32 %v717, %v717
    %720 = vadd.xlane.f32.xlu0 %v718
    %v721 = vpop.xlane.xlu0 %720
    %722 = vadd.xlane.f32.xlu0 %v719
    %v723 = vpop.xlane.xlu0 %722
    %v724 = vmul.f32 %v721, %v713
    %v725 = vmul.f32 %v723, %v713
    %v726 = vadd.f32 %v724, 1e-05
    %v727 = vadd.f32 %v725, 1e-05
    %v728 = vrsqrt.pop %v726
    %v729 = vrsqrt.pop %v727
    %v730 = vmul.f32 %v716, %v728
    %v731 = vmul.f32 %v717, %v729
    %v733 = vlaneseq
    %v734 = vshrl.u32 %v733, 7
    %v735 = vsub.s32 0, %v734
    %v736 = vrot.slane %v707, %v735
    %v738 = vmul.f32 %v730, %v736
    %v739 = vmul.f32 %v731, %v736
    %v741 = vlaneseq
    %v742 = vshrl.u32 %v741, 7
    %v743 = vsub.s32 0, %v742
    %v744 = vrot.slane %v708, %v743
    %v746 = vadd.f32 %v738, %v744
    %v747 = vadd.f32 %v739, %v744
    %v748 = vpack.c.bf16 %v747, %v746
    %v749 = vld [vmem:[#allocation13] sm:$0xff]
    %v750 = vld [vmem:[#allocation13 + $0x8] sm:$0xff]
    %v751 = vld [vmem:[#allocation13 + $0x10] sm:$0xff]
    %v752 = vld [vmem:[#allocation13 + $0x18] sm:$0xff]
    %v753 = vld [vmem:[#allocation13 + $0x20] sm:$0xff]
    %v754 = vld [vmem:[#allocation13 + $0x28] sm:$0xff]
    %v755 = vld [vmem:[#allocation13 + $0x30] sm:$0xff]
    %v756 = vld [vmem:[#allocation13 + $0x38] sm:$0xff]
    %v757 = vld [vmem:[#allocation13 + $0x40] sm:$0xff]
    %v758 = vld [vmem:[#allocation13 + $0x48] sm:$0xff]
    %v759 = vld [vmem:[#allocation13 + $0x50] sm:$0xff]
    %v760 = vld [vmem:[#allocation13 + $0x58] sm:$0xff]
    %v761 = vld [vmem:[#allocation13 + $0x60] sm:$0xff]
    %v762 = vld [vmem:[#allocation13 + $0x68] sm:$0xff]
    %v763 = vld [vmem:[#allocation13 + $0x70] sm:$0xff]
    %v764 = vld [vmem:[#allocation13 + $0x78] sm:$0xff]
    %v765 = vld [vmem:[%s11] sm:$0x3]
    %v767 = vlaneseq
    %v768 = vshrl.u32 %v767, 7
    %v769 = vsub.s32 0, %v768
    %v770 = vrot.slane %v765, %v769
    %v771 = vlaneseq
    %v772 = vshrl.u32 %v771, 7
    %v773 = vsub.s32 1, %v772
    %v774 = vrot.slane %v765, %v773
    %v793 = vunpack.c.l.b16 %v749
    %v794 = vunpack.c.h.b16 %v749
    %v795 = vunpack.c.l.b16 %v750
    %v796 = vunpack.c.h.b16 %v750
    %v797 = vunpack.c.l.b16 %v751
    %v798 = vunpack.c.h.b16 %v751
    %v799 = vunpack.c.l.b16 %v752
    %v800 = vunpack.c.h.b16 %v752
    %v801 = vunpack.c.l.b16 %v753
    %v802 = vunpack.c.h.b16 %v753
    %v803 = vunpack.c.l.b16 %v754
    %v804 = vunpack.c.h.b16 %v754
    %v805 = vunpack.c.l.b16 %v755
    %v806 = vunpack.c.h.b16 %v755
    %v807 = vunpack.c.l.b16 %v756
    %v808 = vunpack.c.h.b16 %v756
    %v809 = vunpack.c.l.b16 %v757
    %v810 = vunpack.c.h.b16 %v757
    %v811 = vunpack.c.l.b16 %v758
    %v812 = vunpack.c.h.b16 %v758
    %v813 = vunpack.c.l.b16 %v759
    %v814 = vunpack.c.h.b16 %v759
    %v815 = vunpack.c.l.b16 %v760
    %v816 = vunpack.c.h.b16 %v760
    %v817 = vunpack.c.l.b16 %v761
    %v818 = vunpack.c.h.b16 %v761
    %v819 = vunpack.c.l.b16 %v762
    %v820 = vunpack.c.h.b16 %v762
    %v821 = vunpack.c.l.b16 %v763
    %v822 = vunpack.c.h.b16 %v763
    %v823 = vunpack.c.l.b16 %v764
    %v824 = vunpack.c.h.b16 %v764
    %v825 = vpack.c.b16 %v795, %v793
    %v826 = vpack.c.b16 %v796, %v794
    %v827 = vpack.c.b16 %v799, %v797
    %v828 = vpack.c.b16 %v800, %v798
    %v829 = vpack.c.b16 %v803, %v801
    %v830 = vpack.c.b16 %v804, %v802
    %v831 = vpack.c.b16 %v807, %v805
    %v832 = vpack.c.b16 %v808, %v806
    %v833 = vpack.c.b16 %v811, %v809
    %v834 = vpack.c.b16 %v812, %v810
    %v835 = vpack.c.b16 %v815, %v813
    %v836 = vpack.c.b16 %v816, %v814
    %v837 = vpack.c.b16 %v819, %v817
    %v838 = vpack.c.b16 %v820, %v818
    %v839 = vpack.c.b16 %v823, %v821
    %v840 = vpack.c.b16 %v824, %v822
    %857 = vmatprep.subr.bf16.mxu0 %v826
    %858 = vmatpush1.bf16.msra.mxu0 %v825
    %859 = vmatprep.subr.bf16.mxu0 %v828
    %860 = vmatpush1.bf16.msra.mxu0 %v827
    %861 = vmatprep.subr.bf16.mxu0 %v830
    %862 = vmatpush1.bf16.msra.mxu0 %v829
    %863 = vmatprep.subr.bf16.mxu0 %v832
    %864 = vmatpush1.bf16.msra.mxu0 %v831
    %865 = vmatprep.subr.bf16.mxu0 %v834
    %866 = vmatpush1.bf16.msra.mxu0 %v833
    %867 = vmatprep.subr.bf16.mxu0 %v836
    %868 = vmatpush1.bf16.msra.mxu0 %v835
    %869 = vmatprep.subr.bf16.mxu0 %v838
    %870 = vmatpush1.bf16.msra.mxu0 %v837
    %871 = vmatprep.subr.bf16.mxu0 %v840
    %872 = vmatpush1.bf16.msra.mxu0 %v839
    %873 = vmatprep.subr.bf16.mxu0 0
    %874 = vmatpush1.bf16.msra.mxu0 0
    %875 = vmatprep.subr.bf16.mxu0 0
    %876 = vmatpush1.bf16.msra.mxu0 0
    %877 = vmatprep.subr.bf16.mxu0 0
    %878 = vmatpush1.bf16.msra.mxu0 0
    %879 = vmatprep.subr.bf16.mxu0 0
    %880 = vmatpush1.bf16.msra.mxu0 0
    %881 = vmatprep.subr.bf16.mxu0 0
    %882 = vmatpush1.bf16.msra.mxu0 0
    %883 = vmatprep.subr.bf16.mxu0 0
    %884 = vmatpush1.bf16.msra.mxu0 0
    %885 = vmatprep.subr.bf16.mxu0 0
    %886 = vmatpush1.bf16.msra.mxu0 0
    %887 = vmatprep.subr.bf16.mxu0 0
    %888 = vmatpush1.bf16.msra.mxu0 0
    %889 = vmatprep.mubr.bf16.mxu0 0
    %890 = vmatmul.mubr.bf16.gmra.mrb[0].mxu0 %v748
    %v891 = vpop.f32.mrb[0].mxu0
    %v892 = vadd.f32 %v770, %v891
    %v893 = vpop.f32.mrb[0].mxu0
    %v894 = vadd.f32 %v774, %v893
    %v895 = vpop.f32.mrb[0].mxu0
    %v896 = vadd.f32 %v770, %v895
    %v897 = vpop.f32.mrb[0].mxu0
    %v898 = vadd.f32 %v774, %v897
    %899 = vdwg.mxu0
    %v900 = vmul.f32 %v892, %v892
    %v901 = vmul.f32 %v894, %v894
    %v902 = vmul.f32 %v896, %v896
    %v903 = vmul.f32 %v898, %v898
    %v904 = vmul.f32 %v892, %v900
    %v905 = vmul.f32 %v894, %v901
    %v906 = vmul.f32 %v896, %v902
    %v907 = vmul.f32 %v898, %v903
    %v908 = vmul.f32 %v904, 0.044715
    %v909 = vmul.f32 %v905, 0.044715
    %v910 = vmul.f32 %v906, 0.044715
    %v911 = vmul.f32 %v907, 0.044715
    %v912 = vadd.f32 %v892, %v908
    %v913 = vadd.f32 %v894, %v909
    %v914 = vadd.f32 %v896, %v910
    %v915 = vadd.f32 %v898, %v911
    %v916 = vmul.f32 %v912, 0.7978846
    %v917 = vmul.f32 %v913, 0.7978846
    %v918 = vmul.f32 %v914, 0.7978846
    %v919 = vmul.f32 %v915, 0.7978846
    %v920 = vtanh.pop %v916
    %v921 = vtanh.pop %v917
    %v922 = vtanh.pop %v918
    %v923 = vtanh.pop %v919
    %v924 = vadd.f32 %v920, 1.0
    %v925 = vadd.f32 %v921, 1.0
    %v926 = vadd.f32 %v922, 1.0
    %v927 = vadd.f32 %v923, 1.0
    %v928 = vmul.f32 %v924, 0.5
    %v929 = vmul.f32 %v925, 0.5
    %v930 = vmul.f32 %v926, 0.5
    %v931 = vmul.f32 %v927, 0.5
    %v932 = vmul.f32 %v892, %v928
    %v933 = vmul.f32 %v894, %v929
    %v934 = vmul.f32 %v896, %v930
    %v935 = vmul.f32 %v898, %v931
    %v936 = vpack.c.bf16 %v934, %v932
    %v937 = vpack.c.bf16 %v935, %v933
    %v938 = vld [vmem:[#allocation14] sm:$0xf]
    %v939 = vld [vmem:[#allocation14 + $0x4] sm:$0xf]
    %v940 = vld [vmem:[#allocation14 + $0x8] sm:$0xf]
    %v941 = vld [vmem:[#allocation14 + $0xc] sm:$0xf]
    %v942 = vld [vmem:[#allocation14 + $0x10] sm:$0xf]
    %v943 = vld [vmem:[#allocation14 + $0x14] sm:$0xf]
    %v944 = vld [vmem:[#allocation14 + $0x18] sm:$0xf]
    %v945 = vld [vmem:[#allocation14 + $0x1c] sm:$0xf]
    %v946 = vld [vmem:[#allocation14 + $0x20] sm:$0xf]
    %v947 = vld [vmem:[#allocation14 + $0x24] sm:$0xf]
    %v948 = vld [vmem:[#allocation14 + $0x28] sm:$0xf]
    %v949 = vld [vmem:[#allocation14 + $0x2c] sm:$0xf]
    %v950 = vld [vmem:[#allocation14 + $0x30] sm:$0xf]
    %v951 = vld [vmem:[#allocation14 + $0x34] sm:$0xf]
    %v952 = vld [vmem:[#allocation14 + $0x38] sm:$0xf]
    %v953 = vld [vmem:[#allocation14 + $0x3c] sm:$0xf]
    %v954 = vld [vmem:[#allocation14 + $0x40] sm:$0xf]
    %v955 = vld [vmem:[#allocation14 + $0x44] sm:$0xf]
    %v956 = vld [vmem:[#allocation14 + $0x48] sm:$0xf]
    %v957 = vld [vmem:[#allocation14 + $0x4c] sm:$0xf]
    %v958 = vld [vmem:[#allocation14 + $0x50] sm:$0xf]
    %v959 = vld [vmem:[#allocation14 + $0x54] sm:$0xf]
    %v960 = vld [vmem:[#allocation14 + $0x58] sm:$0xf]
    %v961 = vld [vmem:[#allocation14 + $0x5c] sm:$0xf]
    %v962 = vld [vmem:[#allocation14 + $0x60] sm:$0xf]
    %v963 = vld [vmem:[#allocation14 + $0x64] sm:$0xf]
    %v964 = vld [vmem:[#allocation14 + $0x68] sm:$0xf]
    %v965 = vld [vmem:[#allocation14 + $0x6c] sm:$0xf]
    %v966 = vld [vmem:[#allocation14 + $0x70] sm:$0xf]
    %v967 = vld [vmem:[#allocation14 + $0x74] sm:$0xf]
    %v968 = vld [vmem:[#allocation14 + $0x78] sm:$0xf]
    %v969 = vld [vmem:[#allocation14 + $0x7c] sm:$0xf]
    %v970 = vld [vmem:[#allocation16] sm:$0x1]
    %v972 = vlaneseq
    %v973 = vshrl.u32 %v972, 7
    %v974 = vsub.s32 0, %v973
    %v975 = vrot.slane %v970, %v974
    %v1009 = vunpack.c.l.b16 %v938
    %v1010 = vunpack.c.l.b16 %v939
    %v1011 = vunpack.c.l.b16 %v940
    %v1012 = vunpack.c.l.b16 %v941
    %v1013 = vunpack.c.l.b16 %v942
    %v1014 = vunpack.c.l.b16 %v943
    %v1015 = vunpack.c.l.b16 %v944
    %v1016 = vunpack.c.l.b16 %v945
    %v1017 = vunpack.c.l.b16 %v946
    %v1018 = vunpack.c.l.b16 %v947
    %v1019 = vunpack.c.l.b16 %v948
    %v1020 = vunpack.c.l.b16 %v949
    %v1021 = vunpack.c.l.b16 %v950
    %v1022 = vunpack.c.l.b16 %v951
    %v1023 = vunpack.c.l.b16 %v952
    %v1024 = vunpack.c.l.b16 %v953
    %v1025 = vunpack.c.l.b16 %v954
    %v1026 = vunpack.c.l.b16 %v955
    %v1027 = vunpack.c.l.b16 %v956
    %v1028 = vunpack.c.l.b16 %v957
    %v1029 = vunpack.c.l.b16 %v958
    %v1030 = vunpack.c.l.b16 %v959
    %v1031 = vunpack.c.l.b16 %v960
    %v1032 = vunpack.c.l.b16 %v961
    %v1033 = vunpack.c.l.b16 %v962
    %v1034 = vunpack.c.l.b16 %v963
    %v1035 = vunpack.c.l.b16 %v964
    %v1036 = vunpack.c.l.b16 %v965
    %v1037 = vunpack.c.l.b16 %v966
    %v1038 = vunpack.c.l.b16 %v967
    %v1039 = vunpack.c.l.b16 %v968
    %v1040 = vunpack.c.l.b16 %v969
    %v1041 = vpack.c.b16 %v1010, %v1009
    %v1042 = vpack.c.b16 %v1012, %v1011
    %v1043 = vpack.c.b16 %v1014, %v1013
    %v1044 = vpack.c.b16 %v1016, %v1015
    %v1045 = vpack.c.b16 %v1018, %v1017
    %v1046 = vpack.c.b16 %v1020, %v1019
    %v1047 = vpack.c.b16 %v1022, %v1021
    %v1048 = vpack.c.b16 %v1024, %v1023
    %v1049 = vpack.c.b16 %v1026, %v1025
    %v1050 = vpack.c.b16 %v1028, %v1027
    %v1051 = vpack.c.b16 %v1030, %v1029
    %v1052 = vpack.c.b16 %v1032, %v1031
    %v1053 = vpack.c.b16 %v1034, %v1033
    %v1054 = vpack.c.b16 %v1036, %v1035
    %v1055 = vpack.c.b16 %v1038, %v1037
    %v1056 = vpack.c.b16 %v1040, %v1039
    %1073 = vmatprep.subr.bf16.mxu0 0
    %1074 = vmatpush1.bf16.msra.mxu0 %v1041
    %1075 = vmatprep.subr.bf16.mxu0 0
    %1076 = vmatpush1.bf16.msra.mxu0 %v1042
    %1077 = vmatprep.subr.bf16.mxu0 0
    %1078 = vmatpush1.bf16.msra.mxu0 %v1043
    %1079 = vmatprep.subr.bf16.mxu0 0
    %1080 = vmatpush1.bf16.msra.mxu0 %v1044
    %1081 = vmatprep.subr.bf16.mxu0 0
    %1082 = vmatpush1.bf16.msra.mxu0 %v1045
    %1083 = vmatprep.subr.bf16.mxu0 0
    %1084 = vmatpush1.bf16.msra.mxu0 %v1046
    %1085 = vmatprep.subr.bf16.mxu0 0
    %1086 = vmatpush1.bf16.msra.mxu0 %v1047
    %1087 = vmatprep.subr.bf16.mxu0 0
    %1088 = vmatpush1.bf16.msra.mxu0 %v1048
    %1089 = vmatprep.subr.bf16.mxu0 0
    %1090 = vmatpush1.bf16.msra.mxu0 %v1049
    %1091 = vmatprep.subr.bf16.mxu0 0
    %1092 = vmatpush1.bf16.msra.mxu0 %v1050
    %1093 = vmatprep.subr.bf16.mxu0 0
    %1094 = vmatpush1.bf16.msra.mxu0 %v1051
    %1095 = vmatprep.subr.bf16.mxu0 0
    %1096 = vmatpush1.bf16.msra.mxu0 %v1052
    %1097 = vmatprep.subr.bf16.mxu0 0
    %1098 = vmatpush1.bf16.msra.mxu0 %v1053
    %1099 = vmatprep.subr.bf16.mxu0 0
    %1100 = vmatpush1.bf16.msra.mxu0 %v1054
    %1101 = vmatprep.subr.bf16.mxu0 0
    %1102 = vmatpush1.bf16.msra.mxu0 %v1055
    %1103 = vmatprep.subr.bf16.mxu0 0
    %1104 = vmatpush1.bf16.msra.mxu0 %v1056
    %1105 = vmatprep.mubr.bf16.mxu0 %v937
    %1106 = vmatmul.mubr.bf16.gmra.mrb[0].mxu0 %v936
    %v1107 = vpop.f32.mrb[0].mxu0
    %v1108 = vadd.f32 %v975, %v1107
    %v1109 = vpop.f32.mrb[0].mxu0
    %v1110 = vpop.f32.mrb[0].mxu0
    %v1111 = vadd.f32 %v975, %v1110
    %v1112 = vpop.f32.mrb[0].mxu0
    %1113 = vdwg.mxu0
    %v1114 = vadd.f32 %v746, %v1108
    %v1115 = vadd.f32 %v747, %v1111
    %v1116 = vld [vmem:[#allocation17] sm:$0x1]
    %v1117 = vld [vmem:[#allocation19] sm:$0x1]
    %1118 = vadd.xlane.f32.xlu0 %v1114
    %v1119 = vpop.xlane.xlu0 %1118
    %1120 = vadd.xlane.f32.xlu0 %v1115
    %v1121 = vpop.xlane.xlu0 %1120
    %v1122 = vmul.f32 %v1119, %v713
    %v1123 = vmul.f32 %v1121, %v713
    %v1124 = vsub.f32 %v1114, %v1122
    %v1125 = vsub.f32 %v1115, %v1123
    %v1126 = vmul.f32 %v1124, %v1124
    %v1127 = vmul.f32 %v1125, %v1125
    %1128 = vadd.xlane.f32.xlu0 %v1126
    %v1129 = vpop.xlane.xlu0 %1128
    %1130 = vadd.xlane.f32.xlu0 %v1127
    %v1131 = vpop.xlane.xlu0 %1130
    %v1132 = vmul.f32 %v1129, %v713
    %v1133 = vmul.f32 %v1131, %v713
    %v1134 = vadd.f32 %v1132, 1e-05
    %v1135 = vadd.f32 %v1133, 1e-05
    %v1136 = vrsqrt.pop %v1134
    %v1137 = vrsqrt.pop %v1135
    %v1138 = vmul.f32 %v1124, %v1136
    %v1139 = vmul.f32 %v1125, %v1137
    %v1141 = vlaneseq
    %v1142 = vshrl.u32 %v1141, 7
    %v1143 = vsub.s32 0, %v1142
    %v1144 = vrot.slane %v1116, %v1143
    %v1146 = vmul.f32 %v1138, %v1144
    %v1147 = vmul.f32 %v1139, %v1144
    %v1149 = vlaneseq
    %v1150 = vshrl.u32 %v1149, 7
    %v1151 = vsub.s32 0, %v1150
    %v1152 = vrot.slane %v1117, %v1151
    %v1154 = vadd.f32 %v1146, %v1152
    %v1155 = vadd.f32 %v1147, %v1152
    %v1156 = vld [vmem:[%s1] sm:$0xff]
    %v1157 = vld [vmem:[%s1 + $0x8] sm:$0xff]
    %vm1158 = vcmask 7168
    %v1159 = vsel %vm1158, %v1156, 0.0
    %v1160 = vrot.slane %v1159, 4
    %v1161 = vadd.f32 %v1159, %v1160
    %v1162 = vrot.slane %v1161, 2
    %v1163 = vadd.f32 %v1161, %v1162
    %v1164 = vrot.slane %v1163, 1
    %v1165 = vadd.f32 %v1163, %v1164
    %v1166 = vsel %vm1158, %v1157, 0.0
    %v1167 = vrot.slane %v1166, 4
    %v1168 = vadd.f32 %v1166, %v1167
    %v1169 = vrot.slane %v1168, 2
    %v1170 = vadd.f32 %v1168, %v1169
    %v1171 = vrot.slane %v1170, 1
    %v1172 = vadd.f32 %v1170, %v1171
    %v1173 = vmax.f32 %v1165, 1e-06
    %v1174 = vmax.f32 %v1172, 1e-06
    %1176 = vset.pattern.permute.xlu0 0
    %1177 = vperm.xlu0 %1176, %v1156
    %v1178 = vpop.permute.xlu0 %1177
    %1181 = vset.pattern.permute.xlu0 0
    %1182 = vperm.xlu0 %1181, %v1157
    %v1183 = vpop.permute.xlu0 %1182
    %v1185 = vmul.f32 %v1154, %v1178
    %v1186 = vmul.f32 %v1155, %v1183
    %v1187 = vrot.slane %v1185, 4
    %v1188 = vadd.f32 %v1185, %v1187
    %v1189 = vrot.slane %v1188, 2
    %v1190 = vadd.f32 %v1188, %v1189
    %v1191 = vrot.slane %v1190, 1
    %v1192 = vadd.f32 %v1190, %v1191
    %v1193 = vrot.slane %v1186, 4
    %v1194 = vadd.f32 %v1186, %v1193
    %v1195 = vrot.slane %v1194, 2
    %v1196 = vadd.f32 %v1194, %v1195
    %v1197 = vrot.slane %v1196, 1
    %v1198 = vadd.f32 %v1196, %v1197
    %v1199 = vrcp.pop %v1173
    %v1200 = vrcp.pop %v1174
    %1202 = vset.pattern.permute.xlu0 0
    %1203 = vperm.xlu0 %1202, %v1199
    %v1204 = vpop.permute.xlu0 %1203
    %1207 = vset.pattern.permute.xlu0 0
    %1208 = vperm.xlu0 %1207, %v1200
    %v1209 = vpop.permute.xlu0 %1208
    %v1211 = vmul.f32 %v1192, %v1204
    %v1212 = vmul.f32 %v1198, %v1209
    %v1213 = vpack.c.bf16 %v1211, %v1211
    %v1214 = vpack.c.bf16 %v1212, %v1212
    %v1215 = vld [vmem:[%s16] sm:$0xf]
    %v1216 = vld [vmem:[%s16 + $0x4] sm:$0xf]
    %v1217 = vld [vmem:[%s16 + $0x8] sm:$0xf]
    %v1218 = vld [vmem:[%s16 + $0xc] sm:$0xf]
    %v1219 = vld [vmem:[%s16 + $0x10] sm:$0xf]
    %v1220 = vld [vmem:[%s16 + $0x14] sm:$0xf]
    %v1221 = vld [vmem:[%s16 + $0x18] sm:$0xf]
    %v1222 = vld [vmem:[%s16 + $0x1c] sm:$0xf]
    %v1223 = vld [vmem:[%s16 + $0x20] sm:$0xf]
    %v1224 = vld [vmem:[%s16 + $0x24] sm:$0xf]
    %v1225 = vld [vmem:[%s16 + $0x28] sm:$0xf]
    %v1226 = vld [vmem:[%s16 + $0x2c] sm:$0xf]
    %v1227 = vld [vmem:[%s16 + $0x30] sm:$0xf]
    %v1228 = vld [vmem:[%s16 + $0x34] sm:$0xf]
    %v1229 = vld [vmem:[%s16 + $0x38] sm:$0xf]
    %v1230 = vld [vmem:[%s16 + $0x3c] sm:$0xf]
    %v1231 = vld [vmem:[%s17] sm:$0x1]
    %v1233 = vlaneseq
    %v1234 = vshrl.u32 %v1233, 7
    %v1235 = vsub.s32 0, %v1234
    %v1236 = vrot.slane %v1231, %v1235
    %v1240 = vunpack.c.l.b16 %v1213
    %v1241 = vunpack.c.l.b16 %v1214
    %vm1242 = vcmask 1041409
    %v1243 = vsel %vm1242, %v1241, %v1240
    %v1244 = vpack.c.b16 %v1243, %v1243
    %v1262 = vunpack.c.l.b16 %v1215
    %v1263 = vunpack.c.l.b16 %v1216
    %v1264 = vunpack.c.l.b16 %v1217
    %v1265 = vunpack.c.l.b16 %v1218
    %v1266 = vunpack.c.l.b16 %v1219
    %v1267 = vunpack.c.l.b16 %v1220
    %v1268 = vunpack.c.l.b16 %v1221
    %v1269 = vunpack.c.l.b16 %v1222
    %v1270 = vunpack.c.l.b16 %v1223
    %v1271 = vunpack.c.l.b16 %v1224
    %v1272 = vunpack.c.l.b16 %v1225
    %v1273 = vunpack.c.l.b16 %v1226
    %v1274 = vunpack.c.l.b16 %v1227
    %v1275 = vunpack.c.l.b16 %v1228
    %v1276 = vunpack.c.l.b16 %v1229
    %v1277 = vunpack.c.l.b16 %v1230
    %v1278 = vpack.c.b16 %v1263, %v1262
    %v1279 = vpack.c.b16 %v1265, %v1264
    %v1280 = vpack.c.b16 %v1267, %v1266
    %v1281 = vpack.c.b16 %v1269, %v1268
    %v1282 = vpack.c.b16 %v1271, %v1270
    %v1283 = vpack.c.b16 %v1273, %v1272
    %v1284 = vpack.c.b16 %v1275, %v1274
    %v1285 = vpack.c.b16 %v1277, %v1276
    %1294 = vmatprep.subr.bf16.mxu0 0
    %1295 = vmatpush1.bf16.msra.mxu0 %v1278
    %1296 = vmatprep.subr.bf16.mxu0 0
    %1297 = vmatpush1.bf16.msra.mxu0 %v1279
    %1298 = vmatprep.subr.bf16.mxu0 0
    %1299 = vmatpush1.bf16.msra.mxu0 %v1280
    %1300 = vmatprep.subr.bf16.mxu0 0
    %1301 = vmatpush1.bf16.msra.mxu0 %v1281
    %1302 = vmatprep.subr.bf16.mxu0 0
    %1303 = vmatpush1.bf16.msra.mxu0 %v1282
    %1304 = vmatprep.subr.bf16.mxu0 0
    %1305 = vmatpush1.bf16.msra.mxu0 %v1283
    %1306 = vmatprep.subr.bf16.mxu0 0
    %1307 = vmatpush1.bf16.msra.mxu0 %v1284
    %1308 = vmatprep.subr.bf16.mxu0 0
    %1309 = vmatpush1.bf16.msra.mxu0 %v1285
    %1310 = vmatprep.subr.bf16.mxu0 0
    %1311 = vmatpush1.bf16.msra.mxu0 0
    %1312 = vmatprep.subr.bf16.mxu0 0
    %1313 = vmatpush1.bf16.msra.mxu0 0
    %1314 = vmatprep.subr.bf16.mxu0 0
    %1315 = vmatpush1.bf16.msra.mxu0 0
    %1316 = vmatprep.subr.bf16.mxu0 0
    %1317 = vmatpush1.bf16.msra.mxu0 0
    %1318 = vmatprep.subr.bf16.mxu0 0
    %1319 = vmatpush1.bf16.msra.mxu0 0
    %1320 = vmatprep.subr.bf16.mxu0 0
    %1321 = vmatpush1.bf16.msra.mxu0 0
    %1322 = vmatprep.subr.bf16.mxu0 0
    %1323 = vmatpush1.bf16.msra.mxu0 0
    %1324 = vmatprep.subr.bf16.mxu0 0
    %1325 = vmatpush1.bf16.msra.mxu0 0
    %1326 = vmatprep.mubr.bf16.mxu0 0
    %1327 = vmatmul.mubr.bf16.gmra.mrb[0].mxu0 %v1244
    %v1328 = vpop.f32.mrb[0].mxu0
    %v1329 = vadd.f32 %v1236, %v1328
    %v1330 = vpop.f32.mrb[0].mxu0
    %v1331 = vpop.f32.mrb[0].mxu0
    %v1332 = vpop.f32.mrb[0].mxu0
    %1333 = vdwg.mxu0
    %1334 = vst [vmem:[#allocation20] sm:$0x3] %v1329
    // Predicated region
    $region118: #{tpu_custom_call.1} parent=1 // pred_check
      _
    $region119: #{tpu_custom_call.1} parent=1 // pred_check_branch
      %1336 = sbr.rel (0) target = $region121
    $region120: #{tpu_custom_call.1} parent=1 // pred_region
      %s1338 = ssub.s32 32, 32
      %1339 = vsyncadd [#allocation4], %s1338
      %s1341 = sshll.u32 [#allocation20], 4
      %s1342 = int_to_ptr.vmem [resolvable:$true] %s1341
      %1344 = dma.vmem_to_hbm [thread:$0]  %s1342, 32, %s18, [#allocation4]
    $region121: #{tpu_custom_call.1} parent=1 // pred_fallthru
      _
    // Predicated region
    $region122: #{tpu_custom_call.1} parent=1 // pred_check
      _
    $region123: #{tpu_custom_call.1} parent=1 // pred_check_branch
      %1346 = sbr.rel (0) target = $region125
    $region124: #{tpu_custom_call.1} parent=1 // pred_region
      %1347 = dma.done [#allocation4], 32
    $region125: #{tpu_custom_call.1} parent=1 // pred_fallthru
      _
    %1348 = vsyncpa [#allocation3], 1
    %1349 = vsyncpa [#allocation6], 1
    %1350 = vsyncpa [#allocation9], 1
    %1351 = vsyncpa [#allocation12], 1
    %1352 = vsyncpa [#allocation15], 1
    %1353 = vsyncpa [#allocation18], 1
    %1354 = vsyncpa [#allocation4], 1

</llo_original>
